<compile_context>
chip_gen: v6e
topology: v6e:2x2x1
jax: 0.10.0
libtpu: 0.0.40
codegen_flags: <defaults>
</compile_context>

<pallas_src>
from math import sqrt

import jax
import jax.numpy as jnp
from jax.experimental import pallas as pl
from jax.experimental.pallas import tpu as pltpu


def _round_up(x: int, m: int) -> int:
    return ((x + m - 1) // m) * m


def _make_rnn_kernel(num_layers: int, tc: int, b_pad: int, nonlinearity: str):
    """Kernel body for a stacked unidirectional RNN, processed layer-by-layer
    over a chunk of tc timesteps.

    Ref layout:
      refs = (x_ref, h0_ref,
              w_ih_0, w_hh_0, b_0, ..., w_ih_{L-1}, w_hh_{L-1}, b_{L-1},
              hist_ref, hfin_ref,
              h_state, u_buf[, layer_buf])
    """
    L = num_layers

    def kernel(*refs):
        x_ref = refs[0]                           # (tc*Bp, Dp)
        h0_ref = refs[1]                          # (L,  Bp, Hp)
        p = refs[2:2 + 3 * L]
        hist_ref = refs[2 + 3 * L]                # (tc, Bp, Hp)
        hfin_ref = refs[3 + 3 * L]                # (L,  Bp, Hp)
        h_state = refs[4 + 3 * L]                 # VMEM (L, Bp, Hp) f32, persistent
        u_buf = refs[5 + 3 * L]                   # VMEM (tc*Bp, Hp) f32
        layer_buf = refs[6 + 3 * L] if L > 1 else None  # VMEM (tc*Bp, Hp) f32

        @pl.when(pl.program_id(0) == 0)
        def _():
            h_state[...] = h0_ref[...].astype(jnp.float32)

        for l in range(L):
            w_ih_ref = p[3 * l]                   # (D_l_pad, Hp)  pre-transposed
            w_hh_ref = p[3 * l + 1]               # (Hp,      Hp)  pre-transposed
            b_ref = p[3 * l + 2]                  # (1,       Hp)  b_ih + b_hh

            # Input->hidden contribution for the WHOLE chunk in one MXU matmul;
            # the lower layer's chunk outputs (layer_buf) were fully produced
            # by the previous layer pass, so reading them here is safe even
            # though this layer's recurrence overwrites layer_buf below.
            src_ref = x_ref if l == 0 else layer_buf
            u_buf[...] = (
                jnp.dot(src_ref[...].astype(jnp.float32), w_ih_ref[...],
                        preferred_element_type=jnp.float32)
                + b_ref[...]                       # (1, Hp) broadcast over rows
            )

            last_layer = (l == L - 1)
            # Sequential recurrence over the chunk (static unroll).  Each step
            # is one small recurrent matmul + EUP tanh / VPU relu, and an
            # unmasked full-vreg store of the layer output.
            for ti in range(tc):
                pre = u_buf[pl.ds(ti * b_pad, b_pad), :] + jnp.dot(
                    h_state[l], w_hh_ref[...],
                    preferred_element_type=jnp.float32)
                if nonlinearity == "tanh":
                    h_new = jnp.tanh(pre)
                else:  # relu
                    h_new = jnp.maximum(pre, 0.0)
                h_state[l] = h_new
                if last_layer:
                    hist_ref[ti] = h_new.astype(hist_ref.dtype)
                else:
                    layer_buf[pl.ds(ti * b_pad, b_pad), :] = h_new

        @pl.when(pl.program_id(0) == pl.num_programs(0) - 1)
        def _():
            hfin_ref[...] = h_state[...].astype(hfin_ref.dtype)

    return kernel


def rnn_forward(x, h0, params, nonlinearity="tanh", time_chunk=16):
    """Forward pass of the stacked RNN.

    x:      (T, B, D_in)
    h0:     (L, B, H)
    params: list of (w_ih (H, D_l), w_hh (H, H), bias (H,))  [bias = b_ih + b_hh]
    Returns (h_history (T, B, H), h_final (L, B, H)).
    """
    T, B, D_in = x.shape
    L = len(params)
    H = params[0][0].shape[0]
    out_dtype = x.dtype

    # Lane/sublane-aligned padded sizes.
    B_pad = _round_up(B, 8)
    H_pad = _round_up(H, 128)
    D_pad = _round_up(D_in, 128)

    # Largest divisor of T that is <= time_chunk (keeps T % Tc == 0).
    tc = 1
    for d in range(1, min(T, time_chunk) + 1):
        if T % d == 0:
            tc = d

    # Zero-pad inputs / initial state; flatten x time+batch for 2-D matmuls.
    x_p = jnp.zeros((T, B_pad, D_pad), x.dtype).at[:, :B, :D_in].set(x)
    x_p = x_p.reshape(T * B_pad, D_pad)
    h0_p = (jnp.zeros((L, B_pad, H_pad), jnp.float32)
            .at[:, :B, :H].set(h0.astype(jnp.float32)))

    flat_params = []
    in_specs = [
        pl.BlockSpec((tc * B_pad, D_pad), lambda c: (c, 0)),     # x chunk
        pl.BlockSpec((L, B_pad, H_pad), lambda c: (0, 0, 0)),    # h0 (full)
    ]
    for l, (w_ih, w_hh, b) in enumerate(params):
        d_l = w_ih.shape[1]
        d_l_pad = D_pad if l == 0 else H_pad
        # Pre-transpose to (K, H) layout; zero-pad.
        w_ih_t = (jnp.zeros((d_l_pad, H_pad), jnp.float32)
                  .at[:d_l, :H].set(w_ih.T.astype(jnp.float32)))
        w_hh_t = (jnp.zeros((H_pad, H_pad), jnp.float32)
                  .at[:H, :H].set(w_hh.T.astype(jnp.float32)))
        b_row = (jnp.zeros((1, H_pad), jnp.float32)
                 .at[0, :H].set(jnp.reshape(b, (-1,)).astype(jnp.float32)))

        flat_params += [w_ih_t, w_hh_t, b_row]
        in_specs += [
            pl.BlockSpec((d_l_pad, H_pad), lambda c: (0, 0)),
            pl.BlockSpec((H_pad, H_pad), lambda c: (0, 0)),
            pl.BlockSpec((1, H_pad), lambda c: (0, 0)),
        ]

    out_shapes = (
        jax.ShapeDtypeStruct((T, B_pad, H_pad), out_dtype),      # h_history (padded)
        jax.ShapeDtypeStruct((L, B_pad, H_pad), out_dtype),      # h_final   (padded)
    )
    out_specs = (
        pl.BlockSpec((tc, B_pad, H_pad), lambda c: (c, 0, 0)),
        pl.BlockSpec((L, B_pad, H_pad), lambda c: (0, 0, 0)),
    )

    scratch_shapes = [
        pltpu.VMEM((L, B_pad, H_pad), jnp.float32),      # hidden state (persists)
        pltpu.VMEM((tc * B_pad, H_pad), jnp.float32),    # chunk input->hidden preacts
    ]
    if L > 1:
        scratch_shapes.append(pltpu.VMEM((tc * B_pad, H_pad), jnp.float32))  # layer outs

    kernel = _make_rnn_kernel(L, tc, B_pad, nonlinearity)
    hist_p, hfin_p = pl.pallas_call(
        kernel,
        out_shape=out_shapes,
        grid_spec=pltpu.PrefetchScalarGridSpec(
            num_scalar_prefetch=0,
            grid=(T // tc,),
            in_specs=in_specs,
            out_specs=out_specs,
            scratch_shapes=scratch_shapes,
        ),
        compiler_params=pltpu.CompilerParams(
            dimension_semantics=("arbitrary",)),   # recurrence is sequential in time
    )(x_p, h0_p, *flat_params)

    # Strip the lane/sublane padding.
    return hist_p[:, :B, :H], hfin_p[:, :B, :H]


def rnn_reference(x, h0, params, nonlinearity="tanh"):
    """Pure-JAX reference mirroring the PyTorch loop semantics."""
    T = x.shape[0]
    L = len(params)
    h = [h0[l] for l in range(L)]
    hist = []
    for t in range(T):
        inp = x[t]
        for l, (w_ih, w_hh, b) in enumerate(params):
            pre = inp @ w_ih.T + h[l] @ w_hh.T + b
            h[l] = jnp.tanh(pre) if nonlinearity == "tanh" else jnp.maximum(pre, 0.0)
            inp = h[l]
        hist.append(h[-1])
    return jnp.stack(hist, axis=0), jnp.stack(h, axis=0)


if __name__ == "__main__":
    # Small shapes consistent with the module's forward:
    #   seq=8, batch=4, input_size=32, hidden_size=32, num_layers=2
    T, B, D_in, H, L = 8, 4, 32, 32, 2
    nonlinearity = "tanh"
    k = 1.0 / sqrt(H)

    key = jax.random.PRNGKey(0)
    key, kx = jax.random.split(key)
    x = jax.random.normal(kx, (T, B, D_in), dtype=jnp.float32)
    h0 = jnp.zeros((L, B, H), dtype=jnp.float32)  # h=None path in PyTorch

    params = []
    for l in range(L):
        d = D_in if l == 0 else H
        key, k1, k2, k3, k4 = jax.random.split(key, 5)
        w_ih = jax.random.uniform(k1, (H, d), jnp.float32, minval=-k, maxval=k)
        w_hh = jax.random.uniform(k2, (H, H), jnp.float32, minval=-k, maxval=k)
        b_ih = jax.random.uniform(k3, (H,), jnp.float32, minval=-k, maxval=k)
        b_hh = jax.random.uniform(k4, (H,), jnp.float32, minval=-k, maxval=k)
        params.append((w_ih, w_hh, b_ih + b_hh))

    h_hist, h_fin = rnn_forward(x, h0, params, nonlinearity)
    jax.block_until_ready((h_hist, h_fin))

    h_hist_ref, h_fin_ref = rnn_reference(x, h0, params, nonlinearity)
    assert h_hist.shape == (T, B, H) and h_fin.shape == (L, B, H)
    assert jnp.allclose(h_hist, h_hist_ref, rtol=1e-5, atol=1e-5)
    assert jnp.allclose(h_fin, h_fin_ref, rtol=1e-5, atol=1e-5)

    print("KERNEL_OK")
</pallas_src>

<mosaic_0001>
module attributes {stable_mosaic.version = 11 : i64} {
  func.func @kernel(%arg0: i32, %arg1: memref<64x128xf32, #tpu.memory_space<vmem>>, %arg2: memref<2x8x128xf32, #tpu.memory_space<vmem>>, %arg3: memref<128x128xf32, #tpu.memory_space<vmem>>, %arg4: memref<128x128xf32, #tpu.memory_space<vmem>>, %arg5: memref<1x128xf32, #tpu.memory_space<vmem>>, %arg6: memref<128x128xf32, #tpu.memory_space<vmem>>, %arg7: memref<128x128xf32, #tpu.memory_space<vmem>>, %arg8: memref<1x128xf32, #tpu.memory_space<vmem>>, %arg9: memref<8x8x128xf32, #tpu.memory_space<vmem>>, %arg10: memref<2x8x128xf32, #tpu.memory_space<vmem>>, %arg11: memref<2x8x128xf32, #tpu.memory_space<vmem>>, %arg12: memref<64x128xf32, #tpu.memory_space<vmem>>, %arg13: memref<64x128xf32, #tpu.memory_space<vmem>>) attributes {dimension_semantics = [#tpu.dimension_semantics<arbitrary>], iteration_bounds = array<i64: 1>, scalar_prefetch = 0 : i64, scratch_operands = 3 : i64, tpu.core_type = #tpu.core_type<tc>, window_params = [{transform_indices = @transform_0, window_bounds = array<i64: 64, 128>}, {pipeline_mode = #tpu.pipeline_mode<synchronous>, transform_indices = @transform_1, window_bounds = array<i64: 2, 8, 128>}, {pipeline_mode = #tpu.pipeline_mode<synchronous>, transform_indices = @transform_2, window_bounds = array<i64: 128, 128>}, {pipeline_mode = #tpu.pipeline_mode<synchronous>, transform_indices = @transform_3, window_bounds = array<i64: 128, 128>}, {pipeline_mode = #tpu.pipeline_mode<synchronous>, transform_indices = @transform_4, window_bounds = array<i64: 1, 128>}, {pipeline_mode = #tpu.pipeline_mode<synchronous>, transform_indices = @transform_5, window_bounds = array<i64: 128, 128>}, {pipeline_mode = #tpu.pipeline_mode<synchronous>, transform_indices = @transform_6, window_bounds = array<i64: 128, 128>}, {pipeline_mode = #tpu.pipeline_mode<synchronous>, transform_indices = @transform_7, window_bounds = array<i64: 1, 128>}, {transform_indices = @transform_8, window_bounds = array<i64: 8, 8, 128>}, {pipeline_mode = #tpu.pipeline_mode<synchronous>, transform_indices = @transform_9, window_bounds = array<i64: 2, 8, 128>}]} {
    %c0_i32 = arith.constant 0 : i32
    %0 = arith.cmpi eq, %arg0, %c0_i32 : i32
    %1 = arith.extui %0 : i1 to i32
    %c0_i32_0 = arith.constant 0 : i32
    %2 = arith.cmpi ne, %1, %c0_i32_0 : i32
    scf.if %2 {
      %c0_221 = arith.constant 0 : index
      %c0_222 = arith.constant 0 : index
      %c0_223 = arith.constant 0 : index
      %212 = vector.load %arg2[%c0_221, %c0_222, %c0_223] : memref<2x8x128xf32, #tpu.memory_space<vmem>>, vector<2x8x128xf32>
      %c0_224 = arith.constant 0 : index
      %c0_225 = arith.constant 0 : index
      %c0_226 = arith.constant 0 : index
      %213 = vector.load %arg11[%c0_224, %c0_225, %c0_226] : memref<2x8x128xf32, #tpu.memory_space<vmem>>, vector<2x8x128xf32>
      tpu.vector_store %arg11[%c0_224, %c0_225, %c0_226], %212 {strides = array<i32>} : memref<2x8x128xf32, #tpu.memory_space<vmem>>, vector<2x8x128xf32>,
    } else {
    }
    %c0 = arith.constant 0 : index
    %c0_1 = arith.constant 0 : index
    %3 = vector.load %arg1[%c0, %c0_1] : memref<64x128xf32, #tpu.memory_space<vmem>>, vector<64x128xf32>
    %c0_2 = arith.constant 0 : index
    %c0_3 = arith.constant 0 : index
    %4 = vector.load %arg3[%c0_2, %c0_3] : memref<128x128xf32, #tpu.memory_space<vmem>>, vector<128x128xf32>
    %cst = arith.constant dense<0.000000e+00> : vector<64x128xf32>
    %5 = tpu.matmul %3, %4, %cst {dimension_numbers = #tpu.dot_dimension_numbers<[1], [0], [0], [1], [0, 0, 1, 1], [], []>} : vector<64x128xf32>, vector<128x128xf32>, vector<64x128xf32> -> vector<64x128xf32>
    %c0_4 = arith.constant 0 : index
    %c0_5 = arith.constant 0 : index
    %6 = vector.load %arg5[%c0_4, %c0_5] : memref<1x128xf32, #tpu.memory_space<vmem>>, vector<1x128xf32>
    %7 = vector.broadcast %6 : vector<1x128xf32> to vector<64x128xf32>
    %8 = arith.addf %5, %7 : vector<64x128xf32>
    %c0_6 = arith.constant 0 : index
    %c0_7 = arith.constant 0 : index
    %9 = vector.load %arg12[%c0_6, %c0_7] : memref<64x128xf32, #tpu.memory_space<vmem>>, vector<64x128xf32>
    tpu.vector_store %arg12[%c0_6, %c0_7], %8 {strides = array<i32>} : memref<64x128xf32, #tpu.memory_space<vmem>>, vector<64x128xf32>,
    %c0_8 = arith.constant 0 : index
    %c0_9 = arith.constant 0 : index
    %10 = vector.load %arg12[%c0_8, %c0_9] : memref<64x128xf32, #tpu.memory_space<vmem>>, vector<8x128xf32>
    %c0_10 = arith.constant 0 : index
    %c0_11 = arith.constant 0 : index
    %c0_12 = arith.constant 0 : index
    %11 = vector.load %arg11[%c0_10, %c0_11, %c0_12] : memref<2x8x128xf32, #tpu.memory_space<vmem>>, vector<1x8x128xf32>
    %12 = vector.shape_cast %11 : vector<1x8x128xf32> to vector<8x128xf32>
    %c0_13 = arith.constant 0 : index
    %c0_14 = arith.constant 0 : index
    %13 = vector.load %arg4[%c0_13, %c0_14] : memref<128x128xf32, #tpu.memory_space<vmem>>, vector<128x128xf32>
    %cst_15 = arith.constant dense<0.000000e+00> : vector<8x128xf32>
    %14 = tpu.matmul %12, %13, %cst_15 {dimension_numbers = #tpu.dot_dimension_numbers<[1], [0], [0], [1], [0, 0, 1, 1], [], []>} : vector<8x128xf32>, vector<128x128xf32>, vector<8x128xf32> -> vector<8x128xf32>
    %15 = arith.addf %10, %14 : vector<8x128xf32>
    %16 = math.tanh %15 : vector<8x128xf32>
    %c0_16 = arith.constant 0 : index
    %c0_17 = arith.constant 0 : index
    %c0_18 = arith.constant 0 : index
    %17 = vector.load %arg11[%c0_16, %c0_17, %c0_18] : memref<2x8x128xf32, #tpu.memory_space<vmem>>, vector<1x8x128xf32>
    %18 = vector.shape_cast %17 : vector<1x8x128xf32> to vector<8x128xf32>
    %19 = vector.shape_cast %16 : vector<8x128xf32> to vector<1x8x128xf32>
    tpu.vector_store %arg11[%c0_16, %c0_17, %c0_18], %19 {strides = array<i32>} : memref<2x8x128xf32, #tpu.memory_space<vmem>>, vector<1x8x128xf32>,
    %c0_19 = arith.constant 0 : index
    %c0_20 = arith.constant 0 : index
    %20 = vector.load %arg13[%c0_19, %c0_20] : memref<64x128xf32, #tpu.memory_space<vmem>>, vector<8x128xf32>
    tpu.vector_store %arg13[%c0_19, %c0_20], %16 {strides = array<i32>} : memref<64x128xf32, #tpu.memory_space<vmem>>, vector<8x128xf32>,
    %c8 = arith.constant 8 : index
    %c0_21 = arith.constant 0 : index
    %21 = vector.load %arg12[%c8, %c0_21] : memref<64x128xf32, #tpu.memory_space<vmem>>, vector<8x128xf32>
    %c0_22 = arith.constant 0 : index
    %c0_23 = arith.constant 0 : index
    %c0_24 = arith.constant 0 : index
    %22 = vector.load %arg11[%c0_22, %c0_23, %c0_24] : memref<2x8x128xf32, #tpu.memory_space<vmem>>, vector<1x8x128xf32>
    %23 = vector.shape_cast %22 : vector<1x8x128xf32> to vector<8x128xf32>
    %c0_25 = arith.constant 0 : index
    %c0_26 = arith.constant 0 : index
    %24 = vector.load %arg4[%c0_25, %c0_26] : memref<128x128xf32, #tpu.memory_space<vmem>>, vector<128x128xf32>
    %cst_27 = arith.constant dense<0.000000e+00> : vector<8x128xf32>
    %25 = tpu.matmul %23, %24, %cst_27 {dimension_numbers = #tpu.dot_dimension_numbers<[1], [0], [0], [1], [0, 0, 1, 1], [], []>} : vector<8x128xf32>, vector<128x128xf32>, vector<8x128xf32> -> vector<8x128xf32>
    %26 = arith.addf %21, %25 : vector<8x128xf32>
    %27 = math.tanh %26 : vector<8x128xf32>
    %c0_28 = arith.constant 0 : index
    %c0_29 = arith.constant 0 : index
    %c0_30 = arith.constant 0 : index
    %28 = vector.load %arg11[%c0_28, %c0_29, %c0_30] : memref<2x8x128xf32, #tpu.memory_space<vmem>>, vector<1x8x128xf32>
    %29 = vector.shape_cast %28 : vector<1x8x128xf32> to vector<8x128xf32>
    %30 = vector.shape_cast %27 : vector<8x128xf32> to vector<1x8x128xf32>
    tpu.vector_store %arg11[%c0_28, %c0_29, %c0_30], %30 {strides = array<i32>} : memref<2x8x128xf32, #tpu.memory_space<vmem>>, vector<1x8x128xf32>,
    %c8_31 = arith.constant 8 : index
    %c0_32 = arith.constant 0 : index
    %31 = vector.load %arg13[%c8_31, %c0_32] : memref<64x128xf32, #tpu.memory_space<vmem>>, vector<8x128xf32>
    tpu.vector_store %arg13[%c8_31, %c0_32], %27 {strides = array<i32>} : memref<64x128xf32, #tpu.memory_space<vmem>>, vector<8x128xf32>,
    %c16 = arith.constant 16 : index
    %c0_33 = arith.constant 0 : index
    %32 = vector.load %arg12[%c16, %c0_33] : memref<64x128xf32, #tpu.memory_space<vmem>>, vector<8x128xf32>
    %c0_34 = arith.constant 0 : index
    %c0_35 = arith.constant 0 : index
    %c0_36 = arith.constant 0 : index
    %33 = vector.load %arg11[%c0_34, %c0_35, %c0_36] : memref<2x8x128xf32, #tpu.memory_space<vmem>>, vector<1x8x128xf32>
    %34 = vector.shape_cast %33 : vector<1x8x128xf32> to vector<8x128xf32>
    %c0_37 = arith.constant 0 : index
    %c0_38 = arith.constant 0 : index
    %35 = vector.load %arg4[%c0_37, %c0_38] : memref<128x128xf32, #tpu.memory_space<vmem>>, vector<128x128xf32>
    %cst_39 = arith.constant dense<0.000000e+00> : vector<8x128xf32>
    %36 = tpu.matmul %34, %35, %cst_39 {dimension_numbers = #tpu.dot_dimension_numbers<[1], [0], [0], [1], [0, 0, 1, 1], [], []>} : vector<8x128xf32>, vector<128x128xf32>, vector<8x128xf32> -> vector<8x128xf32>
    %37 = arith.addf %32, %36 : vector<8x128xf32>
    %38 = math.tanh %37 : vector<8x128xf32>
    %c0_40 = arith.constant 0 : index
    %c0_41 = arith.constant 0 : index
    %c0_42 = arith.constant 0 : index
    %39 = vector.load %arg11[%c0_40, %c0_41, %c0_42] : memref<2x8x128xf32, #tpu.memory_space<vmem>>, vector<1x8x128xf32>
    %40 = vector.shape_cast %39 : vector<1x8x128xf32> to vector<8x128xf32>
    %41 = vector.shape_cast %38 : vector<8x128xf32> to vector<1x8x128xf32>
    tpu.vector_store %arg11[%c0_40, %c0_41, %c0_42], %41 {strides = array<i32>} : memref<2x8x128xf32, #tpu.memory_space<vmem>>, vector<1x8x128xf32>,
    %c16_43 = arith.constant 16 : index
    %c0_44 = arith.constant 0 : index
    %42 = vector.load %arg13[%c16_43, %c0_44] : memref<64x128xf32, #tpu.memory_space<vmem>>, vector<8x128xf32>
    tpu.vector_store %arg13[%c16_43, %c0_44], %38 {strides = array<i32>} : memref<64x128xf32, #tpu.memory_space<vmem>>, vector<8x128xf32>,
    %c24 = arith.constant 24 : index
    %c0_45 = arith.constant 0 : index
    %43 = vector.load %arg12[%c24, %c0_45] : memref<64x128xf32, #tpu.memory_space<vmem>>, vector<8x128xf32>
    %c0_46 = arith.constant 0 : index
    %c0_47 = arith.constant 0 : index
    %c0_48 = arith.constant 0 : index
    %44 = vector.load %arg11[%c0_46, %c0_47, %c0_48] : memref<2x8x128xf32, #tpu.memory_space<vmem>>, vector<1x8x128xf32>
    %45 = vector.shape_cast %44 : vector<1x8x128xf32> to vector<8x128xf32>
    %c0_49 = arith.constant 0 : index
    %c0_50 = arith.constant 0 : index
    %46 = vector.load %arg4[%c0_49, %c0_50] : memref<128x128xf32, #tpu.memory_space<vmem>>, vector<128x128xf32>
    %cst_51 = arith.constant dense<0.000000e+00> : vector<8x128xf32>
    %47 = tpu.matmul %45, %46, %cst_51 {dimension_numbers = #tpu.dot_dimension_numbers<[1], [0], [0], [1], [0, 0, 1, 1], [], []>} : vector<8x128xf32>, vector<128x128xf32>, vector<8x128xf32> -> vector<8x128xf32>
    %48 = arith.addf %43, %47 : vector<8x128xf32>
    %49 = math.tanh %48 : vector<8x128xf32>
    %c0_52 = arith.constant 0 : index
    %c0_53 = arith.constant 0 : index
    %c0_54 = arith.constant 0 : index
    %50 = vector.load %arg11[%c0_52, %c0_53, %c0_54] : memref<2x8x128xf32, #tpu.memory_space<vmem>>, vector<1x8x128xf32>
    %51 = vector.shape_cast %50 : vector<1x8x128xf32> to vector<8x128xf32>
    %52 = vector.shape_cast %49 : vector<8x128xf32> to vector<1x8x128xf32>
    tpu.vector_store %arg11[%c0_52, %c0_53, %c0_54], %52 {strides = array<i32>} : memref<2x8x128xf32, #tpu.memory_space<vmem>>, vector<1x8x128xf32>,
    %c24_55 = arith.constant 24 : index
    %c0_56 = arith.constant 0 : index
    %53 = vector.load %arg13[%c24_55, %c0_56] : memref<64x128xf32, #tpu.memory_space<vmem>>, vector<8x128xf32>
    tpu.vector_store %arg13[%c24_55, %c0_56], %49 {strides = array<i32>} : memref<64x128xf32, #tpu.memory_space<vmem>>, vector<8x128xf32>,
    %c32 = arith.constant 32 : index
    %c0_57 = arith.constant 0 : index
    %54 = vector.load %arg12[%c32, %c0_57] : memref<64x128xf32, #tpu.memory_space<vmem>>, vector<8x128xf32>
    %c0_58 = arith.constant 0 : index
    %c0_59 = arith.constant 0 : index
    %c0_60 = arith.constant 0 : index
    %55 = vector.load %arg11[%c0_58, %c0_59, %c0_60] : memref<2x8x128xf32, #tpu.memory_space<vmem>>, vector<1x8x128xf32>
    %56 = vector.shape_cast %55 : vector<1x8x128xf32> to vector<8x128xf32>
    %c0_61 = arith.constant 0 : index
    %c0_62 = arith.constant 0 : index
    %57 = vector.load %arg4[%c0_61, %c0_62] : memref<128x128xf32, #tpu.memory_space<vmem>>, vector<128x128xf32>
    %cst_63 = arith.constant dense<0.000000e+00> : vector<8x128xf32>
    %58 = tpu.matmul %56, %57, %cst_63 {dimension_numbers = #tpu.dot_dimension_numbers<[1], [0], [0], [1], [0, 0, 1, 1], [], []>} : vector<8x128xf32>, vector<128x128xf32>, vector<8x128xf32> -> vector<8x128xf32>
    %59 = arith.addf %54, %58 : vector<8x128xf32>
    %60 = math.tanh %59 : vector<8x128xf32>
    %c0_64 = arith.constant 0 : index
    %c0_65 = arith.constant 0 : index
    %c0_66 = arith.constant 0 : index
    %61 = vector.load %arg11[%c0_64, %c0_65, %c0_66] : memref<2x8x128xf32, #tpu.memory_space<vmem>>, vector<1x8x128xf32>
    %62 = vector.shape_cast %61 : vector<1x8x128xf32> to vector<8x128xf32>
    %63 = vector.shape_cast %60 : vector<8x128xf32> to vector<1x8x128xf32>
    tpu.vector_store %arg11[%c0_64, %c0_65, %c0_66], %63 {strides = array<i32>} : memref<2x8x128xf32, #tpu.memory_space<vmem>>, vector<1x8x128xf32>,
    %c32_67 = arith.constant 32 : index
    %c0_68 = arith.constant 0 : index
    %64 = vector.load %arg13[%c32_67, %c0_68] : memref<64x128xf32, #tpu.memory_space<vmem>>, vector<8x128xf32>
    tpu.vector_store %arg13[%c32_67, %c0_68], %60 {strides = array<i32>} : memref<64x128xf32, #tpu.memory_space<vmem>>, vector<8x128xf32>,
    %c40 = arith.constant 40 : index
    %c0_69 = arith.constant 0 : index
    %65 = vector.load %arg12[%c40, %c0_69] : memref<64x128xf32, #tpu.memory_space<vmem>>, vector<8x128xf32>
    %c0_70 = arith.constant 0 : index
    %c0_71 = arith.constant 0 : index
    %c0_72 = arith.constant 0 : index
    %66 = vector.load %arg11[%c0_70, %c0_71, %c0_72] : memref<2x8x128xf32, #tpu.memory_space<vmem>>, vector<1x8x128xf32>
    %67 = vector.shape_cast %66 : vector<1x8x128xf32> to vector<8x128xf32>
    %c0_73 = arith.constant 0 : index
    %c0_74 = arith.constant 0 : index
    %68 = vector.load %arg4[%c0_73, %c0_74] : memref<128x128xf32, #tpu.memory_space<vmem>>, vector<128x128xf32>
    %cst_75 = arith.constant dense<0.000000e+00> : vector<8x128xf32>
    %69 = tpu.matmul %67, %68, %cst_75 {dimension_numbers = #tpu.dot_dimension_numbers<[1], [0], [0], [1], [0, 0, 1, 1], [], []>} : vector<8x128xf32>, vector<128x128xf32>, vector<8x128xf32> -> vector<8x128xf32>
    %70 = arith.addf %65, %69 : vector<8x128xf32>
    %71 = math.tanh %70 : vector<8x128xf32>
    %c0_76 = arith.constant 0 : index
    %c0_77 = arith.constant 0 : index
    %c0_78 = arith.constant 0 : index
    %72 = vector.load %arg11[%c0_76, %c0_77, %c0_78] : memref<2x8x128xf32, #tpu.memory_space<vmem>>, vector<1x8x128xf32>
    %73 = vector.shape_cast %72 : vector<1x8x128xf32> to vector<8x128xf32>
    %74 = vector.shape_cast %71 : vector<8x128xf32> to vector<1x8x128xf32>
    tpu.vector_store %arg11[%c0_76, %c0_77, %c0_78], %74 {strides = array<i32>} : memref<2x8x128xf32, #tpu.memory_space<vmem>>, vector<1x8x128xf32>,
    %c40_79 = arith.constant 40 : index
    %c0_80 = arith.constant 0 : index
    %75 = vector.load %arg13[%c40_79, %c0_80] : memref<64x128xf32, #tpu.memory_space<vmem>>, vector<8x128xf32>
    tpu.vector_store %arg13[%c40_79, %c0_80], %71 {strides = array<i32>} : memref<64x128xf32, #tpu.memory_space<vmem>>, vector<8x128xf32>,
    %c48 = arith.constant 48 : index
    %c0_81 = arith.constant 0 : index
    %76 = vector.load %arg12[%c48, %c0_81] : memref<64x128xf32, #tpu.memory_space<vmem>>, vector<8x128xf32>
    %c0_82 = arith.constant 0 : index
    %c0_83 = arith.constant 0 : index
    %c0_84 = arith.constant 0 : index
    %77 = vector.load %arg11[%c0_82, %c0_83, %c0_84] : memref<2x8x128xf32, #tpu.memory_space<vmem>>, vector<1x8x128xf32>
    %78 = vector.shape_cast %77 : vector<1x8x128xf32> to vector<8x128xf32>
    %c0_85 = arith.constant 0 : index
    %c0_86 = arith.constant 0 : index
    %79 = vector.load %arg4[%c0_85, %c0_86] : memref<128x128xf32, #tpu.memory_space<vmem>>, vector<128x128xf32>
    %cst_87 = arith.constant dense<0.000000e+00> : vector<8x128xf32>
    %80 = tpu.matmul %78, %79, %cst_87 {dimension_numbers = #tpu.dot_dimension_numbers<[1], [0], [0], [1], [0, 0, 1, 1], [], []>} : vector<8x128xf32>, vector<128x128xf32>, vector<8x128xf32> -> vector<8x128xf32>
    %81 = arith.addf %76, %80 : vector<8x128xf32>
    %82 = math.tanh %81 : vector<8x128xf32>
    %c0_88 = arith.constant 0 : index
    %c0_89 = arith.constant 0 : index
    %c0_90 = arith.constant 0 : index
    %83 = vector.load %arg11[%c0_88, %c0_89, %c0_90] : memref<2x8x128xf32, #tpu.memory_space<vmem>>, vector<1x8x128xf32>
    %84 = vector.shape_cast %83 : vector<1x8x128xf32> to vector<8x128xf32>
    %85 = vector.shape_cast %82 : vector<8x128xf32> to vector<1x8x128xf32>
    tpu.vector_store %arg11[%c0_88, %c0_89, %c0_90], %85 {strides = array<i32>} : memref<2x8x128xf32, #tpu.memory_space<vmem>>, vector<1x8x128xf32>,
    %c48_91 = arith.constant 48 : index
    %c0_92 = arith.constant 0 : index
    %86 = vector.load %arg13[%c48_91, %c0_92] : memref<64x128xf32, #tpu.memory_space<vmem>>, vector<8x128xf32>
    tpu.vector_store %arg13[%c48_91, %c0_92], %82 {strides = array<i32>} : memref<64x128xf32, #tpu.memory_space<vmem>>, vector<8x128xf32>,
    %c56 = arith.constant 56 : index
    %c0_93 = arith.constant 0 : index
    %87 = vector.load %arg12[%c56, %c0_93] : memref<64x128xf32, #tpu.memory_space<vmem>>, vector<8x128xf32>
    %c0_94 = arith.constant 0 : index
    %c0_95 = arith.constant 0 : index
    %c0_96 = arith.constant 0 : index
    %88 = vector.load %arg11[%c0_94, %c0_95, %c0_96] : memref<2x8x128xf32, #tpu.memory_space<vmem>>, vector<1x8x128xf32>
    %89 = vector.shape_cast %88 : vector<1x8x128xf32> to vector<8x128xf32>
    %c0_97 = arith.constant 0 : index
    %c0_98 = arith.constant 0 : index
    %90 = vector.load %arg4[%c0_97, %c0_98] : memref<128x128xf32, #tpu.memory_space<vmem>>, vector<128x128xf32>
    %cst_99 = arith.constant dense<0.000000e+00> : vector<8x128xf32>
    %91 = tpu.matmul %89, %90, %cst_99 {dimension_numbers = #tpu.dot_dimension_numbers<[1], [0], [0], [1], [0, 0, 1, 1], [], []>} : vector<8x128xf32>, vector<128x128xf32>, vector<8x128xf32> -> vector<8x128xf32>
    %92 = arith.addf %87, %91 : vector<8x128xf32>
    %93 = math.tanh %92 : vector<8x128xf32>
    %c0_100 = arith.constant 0 : index
    %c0_101 = arith.constant 0 : index
    %c0_102 = arith.constant 0 : index
    %94 = vector.load %arg11[%c0_100, %c0_101, %c0_102] : memref<2x8x128xf32, #tpu.memory_space<vmem>>, vector<1x8x128xf32>
    %95 = vector.shape_cast %94 : vector<1x8x128xf32> to vector<8x128xf32>
    %96 = vector.shape_cast %93 : vector<8x128xf32> to vector<1x8x128xf32>
    tpu.vector_store %arg11[%c0_100, %c0_101, %c0_102], %96 {strides = array<i32>} : memref<2x8x128xf32, #tpu.memory_space<vmem>>, vector<1x8x128xf32>,
    %c56_103 = arith.constant 56 : index
    %c0_104 = arith.constant 0 : index
    %97 = vector.load %arg13[%c56_103, %c0_104] : memref<64x128xf32, #tpu.memory_space<vmem>>, vector<8x128xf32>
    tpu.vector_store %arg13[%c56_103, %c0_104], %93 {strides = array<i32>} : memref<64x128xf32, #tpu.memory_space<vmem>>, vector<8x128xf32>,
    %c0_105 = arith.constant 0 : index
    %c0_106 = arith.constant 0 : index
    %98 = vector.load %arg13[%c0_105, %c0_106] : memref<64x128xf32, #tpu.memory_space<vmem>>, vector<64x128xf32>
    %c0_107 = arith.constant 0 : index
    %c0_108 = arith.constant 0 : index
    %99 = vector.load %arg6[%c0_107, %c0_108] : memref<128x128xf32, #tpu.memory_space<vmem>>, vector<128x128xf32>
    %cst_109 = arith.constant dense<0.000000e+00> : vector<64x128xf32>
    %100 = tpu.matmul %98, %99, %cst_109 {dimension_numbers = #tpu.dot_dimension_numbers<[1], [0], [0], [1], [0, 0, 1, 1], [], []>} : vector<64x128xf32>, vector<128x128xf32>, vector<64x128xf32> -> vector<64x128xf32>
    %c0_110 = arith.constant 0 : index
    %c0_111 = arith.constant 0 : index
    %101 = vector.load %arg8[%c0_110, %c0_111] : memref<1x128xf32, #tpu.memory_space<vmem>>, vector<1x128xf32>
    %102 = vector.broadcast %101 : vector<1x128xf32> to vector<64x128xf32>
    %103 = arith.addf %100, %102 : vector<64x128xf32>
    %c0_112 = arith.constant 0 : index
    %c0_113 = arith.constant 0 : index
    %104 = vector.load %arg12[%c0_112, %c0_113] : memref<64x128xf32, #tpu.memory_space<vmem>>, vector<64x128xf32>
    tpu.vector_store %arg12[%c0_112, %c0_113], %103 {strides = array<i32>} : memref<64x128xf32, #tpu.memory_space<vmem>>, vector<64x128xf32>,
    %c0_114 = arith.constant 0 : index
    %c0_115 = arith.constant 0 : index
    %105 = vector.load %arg12[%c0_114, %c0_115] : memref<64x128xf32, #tpu.memory_space<vmem>>, vector<8x128xf32>
    %c1 = arith.constant 1 : index
    %c0_116 = arith.constant 0 : index
    %c0_117 = arith.constant 0 : index
    %106 = vector.load %arg11[%c1, %c0_116, %c0_117] : memref<2x8x128xf32, #tpu.memory_space<vmem>>, vector<1x8x128xf32>
    %107 = vector.shape_cast %106 : vector<1x8x128xf32> to vector<8x128xf32>
    %c0_118 = arith.constant 0 : index
    %c0_119 = arith.constant 0 : index
    %108 = vector.load %arg7[%c0_118, %c0_119] : memref<128x128xf32, #tpu.memory_space<vmem>>, vector<128x128xf32>
    %cst_120 = arith.constant dense<0.000000e+00> : vector<8x128xf32>
    %109 = tpu.matmul %107, %108, %cst_120 {dimension_numbers = #tpu.dot_dimension_numbers<[1], [0], [0], [1], [0, 0, 1, 1], [], []>} : vector<8x128xf32>, vector<128x128xf32>, vector<8x128xf32> -> vector<8x128xf32>
    %110 = arith.addf %105, %109 : vector<8x128xf32>
    %111 = math.tanh %110 : vector<8x128xf32>
    %c1_121 = arith.constant 1 : index
    %c0_122 = arith.constant 0 : index
    %c0_123 = arith.constant 0 : index
    %112 = vector.load %arg11[%c1_121, %c0_122, %c0_123] : memref<2x8x128xf32, #tpu.memory_space<vmem>>, vector<1x8x128xf32>
    %113 = vector.shape_cast %112 : vector<1x8x128xf32> to vector<8x128xf32>
    %114 = vector.shape_cast %111 : vector<8x128xf32> to vector<1x8x128xf32>
    tpu.vector_store %arg11[%c1_121, %c0_122, %c0_123], %114 {strides = array<i32>} : memref<2x8x128xf32, #tpu.memory_space<vmem>>, vector<1x8x128xf32>,
    %c0_124 = arith.constant 0 : index
    %c0_125 = arith.constant 0 : index
    %c0_126 = arith.constant 0 : index
    %115 = vector.load %arg9[%c0_124, %c0_125, %c0_126] : memref<8x8x128xf32, #tpu.memory_space<vmem>>, vector<1x8x128xf32>
    %116 = vector.shape_cast %115 : vector<1x8x128xf32> to vector<8x128xf32>
    %117 = vector.shape_cast %111 : vector<8x128xf32> to vector<1x8x128xf32>
    tpu.vector_store %arg9[%c0_124, %c0_125, %c0_126], %117 {strides = array<i32>} : memref<8x8x128xf32, #tpu.memory_space<vmem>>, vector<1x8x128xf32>,
    %c8_127 = arith.constant 8 : index
    %c0_128 = arith.constant 0 : index
    %118 = vector.load %arg12[%c8_127, %c0_128] : memref<64x128xf32, #tpu.memory_space<vmem>>, vector<8x128xf32>
    %c1_129 = arith.constant 1 : index
    %c0_130 = arith.constant 0 : index
    %c0_131 = arith.constant 0 : index
    %119 = vector.load %arg11[%c1_129, %c0_130, %c0_131] : memref<2x8x128xf32, #tpu.memory_space<vmem>>, vector<1x8x128xf32>
    %120 = vector.shape_cast %119 : vector<1x8x128xf32> to vector<8x128xf32>
    %c0_132 = arith.constant 0 : index
    %c0_133 = arith.constant 0 : index
    %121 = vector.load %arg7[%c0_132, %c0_133] : memref<128x128xf32, #tpu.memory_space<vmem>>, vector<128x128xf32>
    %cst_134 = arith.constant dense<0.000000e+00> : vector<8x128xf32>
    %122 = tpu.matmul %120, %121, %cst_134 {dimension_numbers = #tpu.dot_dimension_numbers<[1], [0], [0], [1], [0, 0, 1, 1], [], []>} : vector<8x128xf32>, vector<128x128xf32>, vector<8x128xf32> -> vector<8x128xf32>
    %123 = arith.addf %118, %122 : vector<8x128xf32>
    %124 = math.tanh %123 : vector<8x128xf32>
    %c1_135 = arith.constant 1 : index
    %c0_136 = arith.constant 0 : index
    %c0_137 = arith.constant 0 : index
    %125 = vector.load %arg11[%c1_135, %c0_136, %c0_137] : memref<2x8x128xf32, #tpu.memory_space<vmem>>, vector<1x8x128xf32>
    %126 = vector.shape_cast %125 : vector<1x8x128xf32> to vector<8x128xf32>
    %127 = vector.shape_cast %124 : vector<8x128xf32> to vector<1x8x128xf32>
    tpu.vector_store %arg11[%c1_135, %c0_136, %c0_137], %127 {strides = array<i32>} : memref<2x8x128xf32, #tpu.memory_space<vmem>>, vector<1x8x128xf32>,
    %c1_138 = arith.constant 1 : index
    %c0_139 = arith.constant 0 : index
    %c0_140 = arith.constant 0 : index
    %128 = vector.load %arg9[%c1_138, %c0_139, %c0_140] : memref<8x8x128xf32, #tpu.memory_space<vmem>>, vector<1x8x128xf32>
    %129 = vector.shape_cast %128 : vector<1x8x128xf32> to vector<8x128xf32>
    %130 = vector.shape_cast %124 : vector<8x128xf32> to vector<1x8x128xf32>
    tpu.vector_store %arg9[%c1_138, %c0_139, %c0_140], %130 {strides = array<i32>} : memref<8x8x128xf32, #tpu.memory_space<vmem>>, vector<1x8x128xf32>,
    %c16_141 = arith.constant 16 : index
    %c0_142 = arith.constant 0 : index
    %131 = vector.load %arg12[%c16_141, %c0_142] : memref<64x128xf32, #tpu.memory_space<vmem>>, vector<8x128xf32>
    %c1_143 = arith.constant 1 : index
    %c0_144 = arith.constant 0 : index
    %c0_145 = arith.constant 0 : index
    %132 = vector.load %arg11[%c1_143, %c0_144, %c0_145] : memref<2x8x128xf32, #tpu.memory_space<vmem>>, vector<1x8x128xf32>
    %133 = vector.shape_cast %132 : vector<1x8x128xf32> to vector<8x128xf32>
    %c0_146 = arith.constant 0 : index
    %c0_147 = arith.constant 0 : index
    %134 = vector.load %arg7[%c0_146, %c0_147] : memref<128x128xf32, #tpu.memory_space<vmem>>, vector<128x128xf32>
    %cst_148 = arith.constant dense<0.000000e+00> : vector<8x128xf32>
    %135 = tpu.matmul %133, %134, %cst_148 {dimension_numbers = #tpu.dot_dimension_numbers<[1], [0], [0], [1], [0, 0, 1, 1], [], []>} : vector<8x128xf32>, vector<128x128xf32>, vector<8x128xf32> -> vector<8x128xf32>
    %136 = arith.addf %131, %135 : vector<8x128xf32>
    %137 = math.tanh %136 : vector<8x128xf32>
    %c1_149 = arith.constant 1 : index
    %c0_150 = arith.constant 0 : index
    %c0_151 = arith.constant 0 : index
    %138 = vector.load %arg11[%c1_149, %c0_150, %c0_151] : memref<2x8x128xf32, #tpu.memory_space<vmem>>, vector<1x8x128xf32>
    %139 = vector.shape_cast %138 : vector<1x8x128xf32> to vector<8x128xf32>
    %140 = vector.shape_cast %137 : vector<8x128xf32> to vector<1x8x128xf32>
    tpu.vector_store %arg11[%c1_149, %c0_150, %c0_151], %140 {strides = array<i32>} : memref<2x8x128xf32, #tpu.memory_space<vmem>>, vector<1x8x128xf32>,
    %c2 = arith.constant 2 : index
    %c0_152 = arith.constant 0 : index
    %c0_153 = arith.constant 0 : index
    %141 = vector.load %arg9[%c2, %c0_152, %c0_153] : memref<8x8x128xf32, #tpu.memory_space<vmem>>, vector<1x8x128xf32>
    %142 = vector.shape_cast %141 : vector<1x8x128xf32> to vector<8x128xf32>
    %143 = vector.shape_cast %137 : vector<8x128xf32> to vector<1x8x128xf32>
    tpu.vector_store %arg9[%c2, %c0_152, %c0_153], %143 {strides = array<i32>} : memref<8x8x128xf32, #tpu.memory_space<vmem>>, vector<1x8x128xf32>,
    %c24_154 = arith.constant 24 : index
    %c0_155 = arith.constant 0 : index
    %144 = vector.load %arg12[%c24_154, %c0_155] : memref<64x128xf32, #tpu.memory_space<vmem>>, vector<8x128xf32>
    %c1_156 = arith.constant 1 : index
    %c0_157 = arith.constant 0 : index
    %c0_158 = arith.constant 0 : index
    %145 = vector.load %arg11[%c1_156, %c0_157, %c0_158] : memref<2x8x128xf32, #tpu.memory_space<vmem>>, vector<1x8x128xf32>
    %146 = vector.shape_cast %145 : vector<1x8x128xf32> to vector<8x128xf32>
    %c0_159 = arith.constant 0 : index
    %c0_160 = arith.constant 0 : index
    %147 = vector.load %arg7[%c0_159, %c0_160] : memref<128x128xf32, #tpu.memory_space<vmem>>, vector<128x128xf32>
    %cst_161 = arith.constant dense<0.000000e+00> : vector<8x128xf32>
    %148 = tpu.matmul %146, %147, %cst_161 {dimension_numbers = #tpu.dot_dimension_numbers<[1], [0], [0], [1], [0, 0, 1, 1], [], []>} : vector<8x128xf32>, vector<128x128xf32>, vector<8x128xf32> -> vector<8x128xf32>
    %149 = arith.addf %144, %148 : vector<8x128xf32>
    %150 = math.tanh %149 : vector<8x128xf32>
    %c1_162 = arith.constant 1 : index
    %c0_163 = arith.constant 0 : index
    %c0_164 = arith.constant 0 : index
    %151 = vector.load %arg11[%c1_162, %c0_163, %c0_164] : memref<2x8x128xf32, #tpu.memory_space<vmem>>, vector<1x8x128xf32>
    %152 = vector.shape_cast %151 : vector<1x8x128xf32> to vector<8x128xf32>
    %153 = vector.shape_cast %150 : vector<8x128xf32> to vector<1x8x128xf32>
    tpu.vector_store %arg11[%c1_162, %c0_163, %c0_164], %153 {strides = array<i32>} : memref<2x8x128xf32, #tpu.memory_space<vmem>>, vector<1x8x128xf32>,
    %c3 = arith.constant 3 : index
    %c0_165 = arith.constant 0 : index
    %c0_166 = arith.constant 0 : index
    %154 = vector.load %arg9[%c3, %c0_165, %c0_166] : memref<8x8x128xf32, #tpu.memory_space<vmem>>, vector<1x8x128xf32>
    %155 = vector.shape_cast %154 : vector<1x8x128xf32> to vector<8x128xf32>
    %156 = vector.shape_cast %150 : vector<8x128xf32> to vector<1x8x128xf32>
    tpu.vector_store %arg9[%c3, %c0_165, %c0_166], %156 {strides = array<i32>} : memref<8x8x128xf32, #tpu.memory_space<vmem>>, vector<1x8x128xf32>,
    %c32_167 = arith.constant 32 : index
    %c0_168 = arith.constant 0 : index
    %157 = vector.load %arg12[%c32_167, %c0_168] : memref<64x128xf32, #tpu.memory_space<vmem>>, vector<8x128xf32>
    %c1_169 = arith.constant 1 : index
    %c0_170 = arith.constant 0 : index
    %c0_171 = arith.constant 0 : index
    %158 = vector.load %arg11[%c1_169, %c0_170, %c0_171] : memref<2x8x128xf32, #tpu.memory_space<vmem>>, vector<1x8x128xf32>
    %159 = vector.shape_cast %158 : vector<1x8x128xf32> to vector<8x128xf32>
    %c0_172 = arith.constant 0 : index
    %c0_173 = arith.constant 0 : index
    %160 = vector.load %arg7[%c0_172, %c0_173] : memref<128x128xf32, #tpu.memory_space<vmem>>, vector<128x128xf32>
    %cst_174 = arith.constant dense<0.000000e+00> : vector<8x128xf32>
    %161 = tpu.matmul %159, %160, %cst_174 {dimension_numbers = #tpu.dot_dimension_numbers<[1], [0], [0], [1], [0, 0, 1, 1], [], []>} : vector<8x128xf32>, vector<128x128xf32>, vector<8x128xf32> -> vector<8x128xf32>
    %162 = arith.addf %157, %161 : vector<8x128xf32>
    %163 = math.tanh %162 : vector<8x128xf32>
    %c1_175 = arith.constant 1 : index
    %c0_176 = arith.constant 0 : index
    %c0_177 = arith.constant 0 : index
    %164 = vector.load %arg11[%c1_175, %c0_176, %c0_177] : memref<2x8x128xf32, #tpu.memory_space<vmem>>, vector<1x8x128xf32>
    %165 = vector.shape_cast %164 : vector<1x8x128xf32> to vector<8x128xf32>
    %166 = vector.shape_cast %163 : vector<8x128xf32> to vector<1x8x128xf32>
    tpu.vector_store %arg11[%c1_175, %c0_176, %c0_177], %166 {strides = array<i32>} : memref<2x8x128xf32, #tpu.memory_space<vmem>>, vector<1x8x128xf32>,
    %c4 = arith.constant 4 : index
    %c0_178 = arith.constant 0 : index
    %c0_179 = arith.constant 0 : index
    %167 = vector.load %arg9[%c4, %c0_178, %c0_179] : memref<8x8x128xf32, #tpu.memory_space<vmem>>, vector<1x8x128xf32>
    %168 = vector.shape_cast %167 : vector<1x8x128xf32> to vector<8x128xf32>
    %169 = vector.shape_cast %163 : vector<8x128xf32> to vector<1x8x128xf32>
    tpu.vector_store %arg9[%c4, %c0_178, %c0_179], %169 {strides = array<i32>} : memref<8x8x128xf32, #tpu.memory_space<vmem>>, vector<1x8x128xf32>,
    %c40_180 = arith.constant 40 : index
    %c0_181 = arith.constant 0 : index
    %170 = vector.load %arg12[%c40_180, %c0_181] : memref<64x128xf32, #tpu.memory_space<vmem>>, vector<8x128xf32>
    %c1_182 = arith.constant 1 : index
    %c0_183 = arith.constant 0 : index
    %c0_184 = arith.constant 0 : index
    %171 = vector.load %arg11[%c1_182, %c0_183, %c0_184] : memref<2x8x128xf32, #tpu.memory_space<vmem>>, vector<1x8x128xf32>
    %172 = vector.shape_cast %171 : vector<1x8x128xf32> to vector<8x128xf32>
    %c0_185 = arith.constant 0 : index
    %c0_186 = arith.constant 0 : index
    %173 = vector.load %arg7[%c0_185, %c0_186] : memref<128x128xf32, #tpu.memory_space<vmem>>, vector<128x128xf32>
    %cst_187 = arith.constant dense<0.000000e+00> : vector<8x128xf32>
    %174 = tpu.matmul %172, %173, %cst_187 {dimension_numbers = #tpu.dot_dimension_numbers<[1], [0], [0], [1], [0, 0, 1, 1], [], []>} : vector<8x128xf32>, vector<128x128xf32>, vector<8x128xf32> -> vector<8x128xf32>
    %175 = arith.addf %170, %174 : vector<8x128xf32>
    %176 = math.tanh %175 : vector<8x128xf32>
    %c1_188 = arith.constant 1 : index
    %c0_189 = arith.constant 0 : index
    %c0_190 = arith.constant 0 : index
    %177 = vector.load %arg11[%c1_188, %c0_189, %c0_190] : memref<2x8x128xf32, #tpu.memory_space<vmem>>, vector<1x8x128xf32>
    %178 = vector.shape_cast %177 : vector<1x8x128xf32> to vector<8x128xf32>
    %179 = vector.shape_cast %176 : vector<8x128xf32> to vector<1x8x128xf32>
    tpu.vector_store %arg11[%c1_188, %c0_189, %c0_190], %179 {strides = array<i32>} : memref<2x8x128xf32, #tpu.memory_space<vmem>>, vector<1x8x128xf32>,
    %c5 = arith.constant 5 : index
    %c0_191 = arith.constant 0 : index
    %c0_192 = arith.constant 0 : index
    %180 = vector.load %arg9[%c5, %c0_191, %c0_192] : memref<8x8x128xf32, #tpu.memory_space<vmem>>, vector<1x8x128xf32>
    %181 = vector.shape_cast %180 : vector<1x8x128xf32> to vector<8x128xf32>
    %182 = vector.shape_cast %176 : vector<8x128xf32> to vector<1x8x128xf32>
    tpu.vector_store %arg9[%c5, %c0_191, %c0_192], %182 {strides = array<i32>} : memref<8x8x128xf32, #tpu.memory_space<vmem>>, vector<1x8x128xf32>,
    %c48_193 = arith.constant 48 : index
    %c0_194 = arith.constant 0 : index
    %183 = vector.load %arg12[%c48_193, %c0_194] : memref<64x128xf32, #tpu.memory_space<vmem>>, vector<8x128xf32>
    %c1_195 = arith.constant 1 : index
    %c0_196 = arith.constant 0 : index
    %c0_197 = arith.constant 0 : index
    %184 = vector.load %arg11[%c1_195, %c0_196, %c0_197] : memref<2x8x128xf32, #tpu.memory_space<vmem>>, vector<1x8x128xf32>
    %185 = vector.shape_cast %184 : vector<1x8x128xf32> to vector<8x128xf32>
    %c0_198 = arith.constant 0 : index
    %c0_199 = arith.constant 0 : index
    %186 = vector.load %arg7[%c0_198, %c0_199] : memref<128x128xf32, #tpu.memory_space<vmem>>, vector<128x128xf32>
    %cst_200 = arith.constant dense<0.000000e+00> : vector<8x128xf32>
    %187 = tpu.matmul %185, %186, %cst_200 {dimension_numbers = #tpu.dot_dimension_numbers<[1], [0], [0], [1], [0, 0, 1, 1], [], []>} : vector<8x128xf32>, vector<128x128xf32>, vector<8x128xf32> -> vector<8x128xf32>
    %188 = arith.addf %183, %187 : vector<8x128xf32>
    %189 = math.tanh %188 : vector<8x128xf32>
    %c1_201 = arith.constant 1 : index
    %c0_202 = arith.constant 0 : index
    %c0_203 = arith.constant 0 : index
    %190 = vector.load %arg11[%c1_201, %c0_202, %c0_203] : memref<2x8x128xf32, #tpu.memory_space<vmem>>, vector<1x8x128xf32>
    %191 = vector.shape_cast %190 : vector<1x8x128xf32> to vector<8x128xf32>
    %192 = vector.shape_cast %189 : vector<8x128xf32> to vector<1x8x128xf32>
    tpu.vector_store %arg11[%c1_201, %c0_202, %c0_203], %192 {strides = array<i32>} : memref<2x8x128xf32, #tpu.memory_space<vmem>>, vector<1x8x128xf32>,
    %c6 = arith.constant 6 : index
    %c0_204 = arith.constant 0 : index
    %c0_205 = arith.constant 0 : index
    %193 = vector.load %arg9[%c6, %c0_204, %c0_205] : memref<8x8x128xf32, #tpu.memory_space<vmem>>, vector<1x8x128xf32>
    %194 = vector.shape_cast %193 : vector<1x8x128xf32> to vector<8x128xf32>
    %195 = vector.shape_cast %189 : vector<8x128xf32> to vector<1x8x128xf32>
    tpu.vector_store %arg9[%c6, %c0_204, %c0_205], %195 {strides = array<i32>} : memref<8x8x128xf32, #tpu.memory_space<vmem>>, vector<1x8x128xf32>,
    %c56_206 = arith.constant 56 : index
    %c0_207 = arith.constant 0 : index
    %196 = vector.load %arg12[%c56_206, %c0_207] : memref<64x128xf32, #tpu.memory_space<vmem>>, vector<8x128xf32>
    %c1_208 = arith.constant 1 : index
    %c0_209 = arith.constant 0 : index
    %c0_210 = arith.constant 0 : index
    %197 = vector.load %arg11[%c1_208, %c0_209, %c0_210] : memref<2x8x128xf32, #tpu.memory_space<vmem>>, vector<1x8x128xf32>
    %198 = vector.shape_cast %197 : vector<1x8x128xf32> to vector<8x128xf32>
    %c0_211 = arith.constant 0 : index
    %c0_212 = arith.constant 0 : index
    %199 = vector.load %arg7[%c0_211, %c0_212] : memref<128x128xf32, #tpu.memory_space<vmem>>, vector<128x128xf32>
    %cst_213 = arith.constant dense<0.000000e+00> : vector<8x128xf32>
    %200 = tpu.matmul %198, %199, %cst_213 {dimension_numbers = #tpu.dot_dimension_numbers<[1], [0], [0], [1], [0, 0, 1, 1], [], []>} : vector<8x128xf32>, vector<128x128xf32>, vector<8x128xf32> -> vector<8x128xf32>
    %201 = arith.addf %196, %200 : vector<8x128xf32>
    %202 = math.tanh %201 : vector<8x128xf32>
    %c1_214 = arith.constant 1 : index
    %c0_215 = arith.constant 0 : index
    %c0_216 = arith.constant 0 : index
    %203 = vector.load %arg11[%c1_214, %c0_215, %c0_216] : memref<2x8x128xf32, #tpu.memory_space<vmem>>, vector<1x8x128xf32>
    %204 = vector.shape_cast %203 : vector<1x8x128xf32> to vector<8x128xf32>
    %205 = vector.shape_cast %202 : vector<8x128xf32> to vector<1x8x128xf32>
    tpu.vector_store %arg11[%c1_214, %c0_215, %c0_216], %205 {strides = array<i32>} : memref<2x8x128xf32, #tpu.memory_space<vmem>>, vector<1x8x128xf32>,
    %c7 = arith.constant 7 : index
    %c0_217 = arith.constant 0 : index
    %c0_218 = arith.constant 0 : index
    %206 = vector.load %arg9[%c7, %c0_217, %c0_218] : memref<8x8x128xf32, #tpu.memory_space<vmem>>, vector<1x8x128xf32>
    %207 = vector.shape_cast %206 : vector<1x8x128xf32> to vector<8x128xf32>
    %208 = vector.shape_cast %202 : vector<8x128xf32> to vector<1x8x128xf32>
    tpu.vector_store %arg9[%c7, %c0_217, %c0_218], %208 {strides = array<i32>} : memref<8x8x128xf32, #tpu.memory_space<vmem>>, vector<1x8x128xf32>,
    %c0_i32_219 = arith.constant 0 : i32
    %209 = arith.cmpi eq, %arg0, %c0_i32_219 : i32
    %210 = arith.extui %209 : i1 to i32
    %c0_i32_220 = arith.constant 0 : i32
    %211 = arith.cmpi ne, %210, %c0_i32_220 : i32
    scf.if %211 {
      %c0_221 = arith.constant 0 : index
      %c0_222 = arith.constant 0 : index
      %c0_223 = arith.constant 0 : index
      %212 = vector.load %arg11[%c0_221, %c0_222, %c0_223] : memref<2x8x128xf32, #tpu.memory_space<vmem>>, vector<2x8x128xf32>
      %c0_224 = arith.constant 0 : index
      %c0_225 = arith.constant 0 : index
      %c0_226 = arith.constant 0 : index
      %213 = vector.load %arg10[%c0_224, %c0_225, %c0_226] : memref<2x8x128xf32, #tpu.memory_space<vmem>>, vector<2x8x128xf32>
      tpu.vector_store %arg10[%c0_224, %c0_225, %c0_226], %212 {strides = array<i32>} : memref<2x8x128xf32, #tpu.memory_space<vmem>>, vector<2x8x128xf32>,
    } else {
    }
    return
  }
  func.func @transform_0(%arg0: i32) -> (i32, i32) {
    %c0_i32 = arith.constant 0 : i32
    %c0_i32_0 = arith.constant 0 : i32
    return %arg0, %c0_i32 : i32, i32
  }
  func.func @transform_1(%arg0: i32) -> (i32, i32, i32) {
    %c0_i32 = arith.constant 0 : i32
    %c0_i32_0 = arith.constant 0 : i32
    %c0_i32_1 = arith.constant 0 : i32
    %c0_i32_2 = arith.constant 0 : i32
    return %c0_i32, %c0_i32_0, %c0_i32_1 : i32, i32, i32
  }
  func.func @transform_2(%arg0: i32) -> (i32, i32) {
    %c0_i32 = arith.constant 0 : i32
    %c0_i32_0 = arith.constant 0 : i32
    %c0_i32_1 = arith.constant 0 : i32
    return %c0_i32, %c0_i32_0 : i32, i32
  }
  func.func @transform_3(%arg0: i32) -> (i32, i32) {
    %c0_i32 = arith.constant 0 : i32
    %c0_i32_0 = arith.constant 0 : i32
    %c0_i32_1 = arith.constant 0 : i32
    return %c0_i32, %c0_i32_0 : i32, i32
  }
  func.func @transform_4(%arg0: i32) -> (i32, i32) {
    %c0_i32 = arith.constant 0 : i32
    %c0_i32_0 = arith.constant 0 : i32
    %c0_i32_1 = arith.constant 0 : i32
    return %c0_i32, %c0_i32_0 : i32, i32
  }
  func.func @transform_5(%arg0: i32) -> (i32, i32) {
    %c0_i32 = arith.constant 0 : i32
    %c0_i32_0 = arith.constant 0 : i32
    %c0_i32_1 = arith.constant 0 : i32
    return %c0_i32, %c0_i32_0 : i32, i32
  }
  func.func @transform_6(%arg0: i32) -> (i32, i32) {
    %c0_i32 = arith.constant 0 : i32
    %c0_i32_0 = arith.constant 0 : i32
    %c0_i32_1 = arith.constant 0 : i32
    return %c0_i32, %c0_i32_0 : i32, i32
  }
  func.func @transform_7(%arg0: i32) -> (i32, i32) {
    %c0_i32 = arith.constant 0 : i32
    %c0_i32_0 = arith.constant 0 : i32
    %c0_i32_1 = arith.constant 0 : i32
    return %c0_i32, %c0_i32_0 : i32, i32
  }
  func.func @transform_8(%arg0: i32) -> (i32, i32, i32) {
    %c0_i32 = arith.constant 0 : i32
    %c0_i32_0 = arith.constant 0 : i32
    %c0_i32_1 = arith.constant 0 : i32
    return %arg0, %c0_i32, %c0_i32_0 : i32, i32, i32
  }
  func.func @transform_9(%arg0: i32) -> (i32, i32, i32) {
    %c0_i32 = arith.constant 0 : i32
    %c0_i32_0 = arith.constant 0 : i32
    %c0_i32_1 = arith.constant 0 : i32
    %c0_i32_2 = arith.constant 0 : i32
    return %c0_i32, %c0_i32_0, %c0_i32_1 : i32, i32, i32
  }
}

</mosaic_0001>

<llo_original>
// kernel: tpu_custom_call.1
$region0: #{tpu_custom_call.1}
  #allocation0 [shape = 'u32[]', space=smem, size = 0x4, offset = 0x4, fixed_abs, tag = 'smem constant byte address 0x4 - core index']
  #allocation1 [shape = 'u32[144,128]{1,0:T(1,128)}', space=vmem, size = 0x12000, scoped, tag = 'internal scratch']
  #allocation2 [shape = 'f32[2,8,128]{2,1,0:T(8,128)}', space=vmem, size = 0x2000, scoped, tag = 'scratch operand']
  #allocation3 [shape = 'f32[64,128]{1,0:T(8,128)}', space=vmem, size = 0x8000, scoped, tag = 'scratch operand']
  #allocation4 [shape = 'f32[64,128]{1,0:T(8,128)}', space=vmem, size = 0x8000, scoped, tag = 'scratch operand']
  %s0 = inlined_call_operand.hbm [shape: f32[64,128], index: 0, kind: input, shape index: {}]
  %s1 = inlined_call_operand.hbm [shape: f32[2,8,128], index: 1, kind: input, shape index: {}]
  %s2 = inlined_call_operand.hbm [shape: f32[128,128], index: 2, kind: input, shape index: {}]
  %s3 = inlined_call_operand.hbm [shape: f32[128,128], index: 3, kind: input, shape index: {}]
  %s4 = inlined_call_operand.vmem [shape: f32[1,128], index: 4, kind: input, shape index: {}]
  %s5 = inlined_call_operand.hbm [shape: f32[128,128], index: 5, kind: input, shape index: {}]
  %s6 = inlined_call_operand.hbm [shape: f32[128,128], index: 6, kind: input, shape index: {}]
  %s7 = inlined_call_operand.vmem [shape: f32[1,128], index: 7, kind: input, shape index: {}]
  %s8 = inlined_call_operand.hbm [shape: f32[8,8,128], index: 8, kind: output, shape index: {0}]
  %s9 = inlined_call_operand.hbm [shape: f32[2,8,128], index: 9, kind: output, shape index: {1}]
  %10 = xla_tuple %s8, %s9
  %s11 = sld [smem:[#allocation0]]
  $region82: #{tpu_custom_call.1} parent=0
    _
  %s13 = ssub.s32 1, %s11
  %s14 = scalar_select 0, %s13, %s11
  $region1: #{tpu_custom_call.1} parent=0
    #allocation5 [shape = 'u8[32768]{0}', space=vmem, size = 0x8000, scoped, tag = 'input window, operand 0, single buffered']
    #allocation6 [shape = 's32[1]{0}', space=sflag, size = 0x4, scoped, tag = 'scoped memory for tpu_custom_call.1']
    #allocation7 [shape = 's32[1]{0}', space=sflag, size = 0x4, scoped, tag = 'scoped memory for tpu_custom_call.1']
    #allocation8 [shape = 'u8[8192]{0}', space=vmem, size = 0x2000, scoped, tag = 'input window, operand 1, single buffered']
    #allocation9 [shape = 's32[1]{0}', space=sflag, size = 0x4, scoped, tag = 'scoped memory for tpu_custom_call.1']
    #allocation10 [shape = 'u8[65536]{0}', space=vmem, size = 0x10000, scoped, tag = 'input window, operand 2, single buffered']
    #allocation11 [shape = 'u8[65536]{0}', space=vmem, size = 0x10000, scoped, tag = 'input window, operand 3, single buffered']
    #allocation12 [shape = 's32[1]{0}', space=sflag, size = 0x4, scoped, tag = 'scoped memory for tpu_custom_call.1']
    #allocation13 [shape = 'u8[65536]{0}', space=vmem, size = 0x10000, scoped, tag = 'input window, operand 5, single buffered']
    #allocation14 [shape = 'u8[65536]{0}', space=vmem, size = 0x10000, scoped, tag = 'input window, operand 6, single buffered']
    #allocation15 [shape = 's32[1]{0}', space=sflag, size = 0x4, scoped, tag = 'scoped memory for tpu_custom_call.1']
    #allocation16 [shape = 'u8[32768]{0}', space=vmem, size = 0x8000, scoped, tag = 'output window, operand 0, single buffered']
    #allocation17 [shape = 'u8[8192]{0}', space=vmem, size = 0x2000, scoped, tag = 'output window, operand 1, single buffered']
    #allocation18 [shape = 's32[1]{0}', space=sflag, size = 0x4, scoped, tag = 'scoped memory for tpu_custom_call.1']
    %15 = vsyncpa [#allocation6], 0
    %16 = vsyncpa [#allocation9], 0
    %17 = vsyncpa [#allocation12], 0
    %18 = vsyncpa [#allocation15], 0
    %19 = vsyncpa [#allocation7], 0
    %20 = vsyncpa [#allocation18], 0
    // Predicated region
    $region2: #{tpu_custom_call.1} parent=1 // pred_check
      _
    $region3: #{tpu_custom_call.1} parent=1 // pred_check_branch
      %22 = sbr.rel (0) target = $region5
    $region4: #{tpu_custom_call.1} parent=1 // pred_region
      %s24 = ssub.s32 1024, 1024
      %25 = vsyncadd [#allocation6], %s24
      %s26 = sshll.u32 [#allocation5], 4
      %s27 = int_to_ptr.vmem [resolvable:$true] %s26
      %32 = dma.hbm_to_vmem [thread:$0]  %s0, 1024, %s27, [#allocation6], 128, 128, 8
    $region5: #{tpu_custom_call.1} parent=1 // pred_fallthru
      _
    // Predicated region
    $region6: #{tpu_custom_call.1} parent=1 // pred_check
      _
    $region7: #{tpu_custom_call.1} parent=1 // pred_check_branch
      %34 = sbr.rel (0) target = $region9
    $region8: #{tpu_custom_call.1} parent=1 // pred_region
      %s36 = ssub.s32 256, 256
      %37 = vsyncadd [#allocation9], %s36
      %s38 = sshll.u32 [#allocation8], 4
      %s39 = int_to_ptr.vmem [resolvable:$true] %s38
      %44 = dma.hbm_to_vmem [thread:$0]  %s1, 256, %s39, [#allocation9], 128, 128, 8
    $region9: #{tpu_custom_call.1} parent=1 // pred_fallthru
      _
    // Predicated region
    $region10: #{tpu_custom_call.1} parent=1 // pred_check
      _
    $region11: #{tpu_custom_call.1} parent=1 // pred_check_branch
      %46 = sbr.rel (0) target = $region13
    $region12: #{tpu_custom_call.1} parent=1 // pred_region
      %s48 = ssub.s32 2048, 2048
      %49 = vsyncadd [#allocation9], %s48
      %s50 = sshll.u32 [#allocation10], 4
      %s51 = int_to_ptr.vmem [resolvable:$true] %s50
      %56 = dma.hbm_to_vmem [thread:$0]  %s2, 2048, %s51, [#allocation9], 128, 128, 8
    $region13: #{tpu_custom_call.1} parent=1 // pred_fallthru
      _
    // Predicated region
    $region14: #{tpu_custom_call.1} parent=1 // pred_check
      _
    $region15: #{tpu_custom_call.1} parent=1 // pred_check_branch
      %58 = sbr.rel (0) target = $region17
    $region16: #{tpu_custom_call.1} parent=1 // pred_region
      %s60 = ssub.s32 2048, 2048
      %61 = vsyncadd [#allocation12], %s60
      %s62 = sshll.u32 [#allocation11], 4
      %s63 = int_to_ptr.vmem [resolvable:$true] %s62
      %68 = dma.hbm_to_vmem [thread:$0]  %s3, 2048, %s63, [#allocation12], 128, 128, 8
    $region17: #{tpu_custom_call.1} parent=1 // pred_fallthru
      _
    // Predicated region
    $region18: #{tpu_custom_call.1} parent=1 // pred_check
      _
    $region19: #{tpu_custom_call.1} parent=1 // pred_check_branch
      %70 = sbr.rel (0) target = $region21
    $region20: #{tpu_custom_call.1} parent=1 // pred_region
      _
    $region21: #{tpu_custom_call.1} parent=1 // pred_fallthru
      _
    // Predicated region
    $region22: #{tpu_custom_call.1} parent=1 // pred_check
      _
    $region23: #{tpu_custom_call.1} parent=1 // pred_check_branch
      %72 = sbr.rel (0) target = $region25
    $region24: #{tpu_custom_call.1} parent=1 // pred_region
      %s74 = ssub.s32 2048, 2048
      %75 = vsyncadd [#allocation12], %s74
      %s76 = sshll.u32 [#allocation13], 4
      %s77 = int_to_ptr.vmem [resolvable:$true] %s76
      %82 = dma.hbm_to_vmem [thread:$0]  %s5, 2048, %s77, [#allocation12], 128, 128, 8
    $region25: #{tpu_custom_call.1} parent=1 // pred_fallthru
      _
    // Predicated region
    $region26: #{tpu_custom_call.1} parent=1 // pred_check
      _
    $region27: #{tpu_custom_call.1} parent=1 // pred_check_branch
      %84 = sbr.rel (0) target = $region29
    $region28: #{tpu_custom_call.1} parent=1 // pred_region
      %s86 = ssub.s32 2048, 2048
      %87 = vsyncadd [#allocation15], %s86
      %s88 = sshll.u32 [#allocation14], 4
      %s89 = int_to_ptr.vmem [resolvable:$true] %s88
      %94 = dma.hbm_to_vmem [thread:$0]  %s6, 2048, %s89, [#allocation15], 128, 128, 8
    $region29: #{tpu_custom_call.1} parent=1 // pred_fallthru
      _
    // Predicated region
    $region30: #{tpu_custom_call.1} parent=1 // pred_check
      _
    $region31: #{tpu_custom_call.1} parent=1 // pred_check_branch
      %96 = sbr.rel (0) target = $region33
    $region32: #{tpu_custom_call.1} parent=1 // pred_region
      _
    $region33: #{tpu_custom_call.1} parent=1 // pred_fallthru
      _
    // Predicated region
    $region34: #{tpu_custom_call.1} parent=1 // pred_check
      _
    $region35: #{tpu_custom_call.1} parent=1 // pred_check_branch
      %98 = sbr.rel (0) target = $region37
    $region36: #{tpu_custom_call.1} parent=1 // pred_region
      %99 = dma.done [#allocation6], 1024
    $region37: #{tpu_custom_call.1} parent=1 // pred_fallthru
      _
    // Predicated region
    $region38: #{tpu_custom_call.1} parent=1 // pred_check
      _
    $region39: #{tpu_custom_call.1} parent=1 // pred_check_branch
      %101 = sbr.rel (0) target = $region41
    $region40: #{tpu_custom_call.1} parent=1 // pred_region
      %102 = dma.done [#allocation9], 256
    $region41: #{tpu_custom_call.1} parent=1 // pred_fallthru
      _
    // Predicated region
    $region42: #{tpu_custom_call.1} parent=1 // pred_check
      _
    $region43: #{tpu_custom_call.1} parent=1 // pred_check_branch
      %104 = sbr.rel (0) target = $region45
    $region44: #{tpu_custom_call.1} parent=1 // pred_region
      %105 = dma.done [#allocation9], 2048
    $region45: #{tpu_custom_call.1} parent=1 // pred_fallthru
      _
    // Predicated region
    $region46: #{tpu_custom_call.1} parent=1 // pred_check
      _
    $region47: #{tpu_custom_call.1} parent=1 // pred_check_branch
      %107 = sbr.rel (0) target = $region49
    $region48: #{tpu_custom_call.1} parent=1 // pred_region
      %108 = dma.done [#allocation12], 2048
    $region49: #{tpu_custom_call.1} parent=1 // pred_fallthru
      _
    // Predicated region
    $region50: #{tpu_custom_call.1} parent=1 // pred_check
      _
    $region51: #{tpu_custom_call.1} parent=1 // pred_check_branch
      %110 = sbr.rel (0) target = $region53
    $region52: #{tpu_custom_call.1} parent=1 // pred_region
      %111 = dma.done [#allocation12], 2048
    $region53: #{tpu_custom_call.1} parent=1 // pred_fallthru
      _
    // Predicated region
    $region54: #{tpu_custom_call.1} parent=1 // pred_check
      _
    $region55: #{tpu_custom_call.1} parent=1 // pred_check_branch
      %113 = sbr.rel (0) target = $region57
    $region56: #{tpu_custom_call.1} parent=1 // pred_region
      %114 = dma.done [#allocation15], 2048
    $region57: #{tpu_custom_call.1} parent=1 // pred_fallthru
      _
    %p115 = scmp.eq.s32.totalorder 0, 0
    // Predicated region
    $region58: #{tpu_custom_call.1} parent=1 // pred_check
      %p116 = pneg %p115
    $region59: #{tpu_custom_call.1} parent=1 // pred_check_branch
      %118 = sbr.rel (%p116) target = $region61
    $region60: #{tpu_custom_call.1} parent=1 // pred_region
      %v119 = vld [vmem:[#allocation8] sm:$0xff]
      %v120 = vld [vmem:[#allocation8 + $0x8] sm:$0xff]
      %121 = vst [vmem:[#allocation2] sm:$0xff] %v119
      %122 = vst [vmem:[#allocation2 + $0x8] sm:$0xff] %v120
    $region61: #{tpu_custom_call.1} parent=1 // pred_fallthru
      _
    %v123 = vld [vmem:[#allocation5] sm:$0xff]
    %v124 = vld [vmem:[#allocation5 + $0x8] sm:$0xff]
    %v125 = vld [vmem:[#allocation5 + $0x10] sm:$0xff]
    %v126 = vld [vmem:[#allocation5 + $0x18] sm:$0xff]
    %v127 = vld [vmem:[#allocation5 + $0x20] sm:$0xff]
    %v128 = vld [vmem:[#allocation5 + $0x28] sm:$0xff]
    %v129 = vld [vmem:[#allocation5 + $0x30] sm:$0xff]
    %v130 = vld [vmem:[#allocation5 + $0x38] sm:$0xff]
    %v131 = vld [vmem:[#allocation10] sm:$0xff]
    %v132 = vld [vmem:[#allocation10 + $0x8] sm:$0xff]
    %v133 = vld [vmem:[#allocation10 + $0x10] sm:$0xff]
    %v134 = vld [vmem:[#allocation10 + $0x18] sm:$0xff]
    %v135 = vld [vmem:[#allocation10 + $0x20] sm:$0xff]
    %v136 = vld [vmem:[#allocation10 + $0x28] sm:$0xff]
    %v137 = vld [vmem:[#allocation10 + $0x30] sm:$0xff]
    %v138 = vld [vmem:[#allocation10 + $0x38] sm:$0xff]
    %v139 = vld [vmem:[#allocation10 + $0x40] sm:$0xff]
    %v140 = vld [vmem:[#allocation10 + $0x48] sm:$0xff]
    %v141 = vld [vmem:[#allocation10 + $0x50] sm:$0xff]
    %v142 = vld [vmem:[#allocation10 + $0x58] sm:$0xff]
    %v143 = vld [vmem:[#allocation10 + $0x60] sm:$0xff]
    %v144 = vld [vmem:[#allocation10 + $0x68] sm:$0xff]
    %v145 = vld [vmem:[#allocation10 + $0x70] sm:$0xff]
    %v146 = vld [vmem:[#allocation10 + $0x78] sm:$0xff]
    %v147 = vld [vmem:[%s4] sm:$0x1]
    %v149 = vlaneseq
    %v150 = vshrl.u32 %v149, 7
    %v151 = vsub.s32 0, %v150
    %v152 = vrot.slane %v147, %v151
    %154 = vmatprep.subr.mxu0 0.0
    %155 = vmatpush1.msra.mxu0 %v146
    %156 = vmatprep.subr.mxu0 0.0
    %157 = vmatpush1.msra.mxu0 %v145
    %158 = vmatprep.subr.mxu0 0.0
    %159 = vmatpush1.msra.mxu0 %v144
    %160 = vmatprep.subr.mxu0 0.0
    %161 = vmatpush1.msra.mxu0 %v143
    %162 = vmatprep.subr.mxu0 0.0
    %163 = vmatpush1.msra.mxu0 %v142
    %164 = vmatprep.subr.mxu0 0.0
    %165 = vmatpush1.msra.mxu0 %v141
    %166 = vmatprep.subr.mxu0 0.0
    %167 = vmatpush1.msra.mxu0 %v140
    %168 = vmatprep.subr.mxu0 0.0
    %169 = vmatpush1.msra.mxu0 %v139
    %170 = vmatprep.subr.mxu0 0.0
    %171 = vmatpush1.msra.mxu0 %v138
    %172 = vmatprep.subr.mxu0 0.0
    %173 = vmatpush1.msra.mxu0 %v137
    %174 = vmatprep.subr.mxu0 0.0
    %175 = vmatpush1.msra.mxu0 %v136
    %176 = vmatprep.subr.mxu0 0.0
    %177 = vmatpush1.msra.mxu0 %v135
    %178 = vmatprep.subr.mxu0 0.0
    %179 = vmatpush1.msra.mxu0 %v134
    %180 = vmatprep.subr.mxu0 0.0
    %181 = vmatpush1.msra.mxu0 %v133
    %182 = vmatprep.subr.mxu0 0.0
    %183 = vmatpush1.msra.mxu0 %v132
    %184 = vmatprep.subr.mxu0 0.0
    %185 = vmatpush1.msra.mxu0 %v131
    %186 = vmatprep.subr.mxu0 0.0
    %187 = vmatpush2.msra.mxu0 0.0
    %188 = vmatprep.subr.mxu0 0.0
    %189 = vmatpush2.msra.mxu0 0.0
    %190 = vmatprep.subr.mxu0 0.0
    %191 = vmatpush2.msra.mxu0 0.0
    %192 = vmatprep.subr.mxu0 0.0
    %193 = vmatpush2.msra.mxu0 0.0
    %194 = vmatprep.subr.mxu0 0.0
    %195 = vmatpush2.msra.mxu0 0.0
    %196 = vmatprep.subr.mxu0 0.0
    %197 = vmatpush2.msra.mxu0 0.0
    %198 = vmatprep.subr.mxu0 0.0
    %199 = vmatpush2.msra.mxu0 0.0
    %200 = vmatprep.subr.mxu0 0.0
    %201 = vmatpush2.msra.mxu0 0.0
    %202 = vmatprep.subr.mxu0 0.0
    %203 = vmatpush2.msra.mxu0 0.0
    %204 = vmatprep.subr.mxu0 0.0
    %205 = vmatpush2.msra.mxu0 0.0
    %206 = vmatprep.subr.mxu0 0.0
    %207 = vmatpush2.msra.mxu0 0.0
    %208 = vmatprep.subr.mxu0 0.0
    %209 = vmatpush2.msra.mxu0 0.0
    %210 = vmatprep.subr.mxu0 0.0
    %211 = vmatpush2.msra.mxu0 0.0
    %212 = vmatprep.subr.mxu0 0.0
    %213 = vmatpush2.msra.mxu0 0.0
    %214 = vmatprep.subr.mxu0 0.0
    %215 = vmatpush2.msra.mxu0 0.0
    %216 = vmatprep.subr.mxu0 0.0
    %217 = vmatpush2.msra.mxu0 0.0
    %218 = vmatprep.mubr.f32.mxu0 0.0
    %219 = vmatmul.mubr.f32.gmra.mxu0 %v123
    %v220 = vpop.f32.mrf.mxu0
    %v221 = vadd.f32 %v152, %v220
    %v222 = vpop.f32.mrf.mxu0
    %223 = vmatprep.mubr.f32.mxu0 0.0
    %224 = vmatmul.mubr.f32.gmra.mxu0 %v124
    %v225 = vpop.f32.mrf.mxu0
    %v226 = vadd.f32 %v152, %v225
    %v227 = vpop.f32.mrf.mxu0
    %228 = vmatprep.mubr.f32.mxu0 0.0
    %229 = vmatmul.mubr.f32.gmra.mxu0 %v125
    %v230 = vpop.f32.mrf.mxu0
    %v231 = vadd.f32 %v152, %v230
    %v232 = vpop.f32.mrf.mxu0
    %233 = vmatprep.mubr.f32.mxu0 0.0
    %234 = vmatmul.mubr.f32.gmra.mxu0 %v126
    %v235 = vpop.f32.mrf.mxu0
    %v236 = vadd.f32 %v152, %v235
    %v237 = vpop.f32.mrf.mxu0
    %238 = vmatprep.mubr.f32.mxu0 0.0
    %239 = vmatmul.mubr.f32.gmra.mxu0 %v127
    %v240 = vpop.f32.mrf.mxu0
    %v241 = vadd.f32 %v152, %v240
    %v242 = vpop.f32.mrf.mxu0
    %243 = vmatprep.mubr.f32.mxu0 0.0
    %244 = vmatmul.mubr.f32.gmra.mxu0 %v128
    %v245 = vpop.f32.mrf.mxu0
    %v246 = vadd.f32 %v152, %v245
    %v247 = vpop.f32.mrf.mxu0
    %248 = vmatprep.mubr.f32.mxu0 0.0
    %249 = vmatmul.mubr.f32.gmra.mxu0 %v129
    %v250 = vpop.f32.mrf.mxu0
    %v251 = vadd.f32 %v152, %v250
    %v252 = vpop.f32.mrf.mxu0
    %253 = vmatprep.mubr.f32.mxu0 0.0
    %254 = vmatmul.mubr.f32.gmra.mxu0 %v130
    %v255 = vpop.f32.mrf.mxu0
    %v256 = vadd.f32 %v152, %v255
    %v257 = vpop.f32.mrf.mxu0
    %258 = vdwg.mxu0
    %259 = vst [vmem:[#allocation3] sm:$0xff] %v221
    %260 = vst [vmem:[#allocation3 + $0x8] sm:$0xff] %v226
    %261 = vst [vmem:[#allocation3 + $0x10] sm:$0xff] %v231
    %262 = vst [vmem:[#allocation3 + $0x18] sm:$0xff] %v236
    %263 = vst [vmem:[#allocation3 + $0x20] sm:$0xff] %v241
    %264 = vst [vmem:[#allocation3 + $0x28] sm:$0xff] %v246
    %265 = vst [vmem:[#allocation3 + $0x30] sm:$0xff] %v251
    %266 = vst [vmem:[#allocation3 + $0x38] sm:$0xff] %v256
    %v267 = vld [vmem:[#allocation3] sm:$0xff]
    %v268 = vld [vmem:[#allocation2] sm:$0xff]
    %v269 = vld [vmem:[#allocation11] sm:$0xff]
    %v270 = vld [vmem:[#allocation11 + $0x8] sm:$0xff]
    %v271 = vld [vmem:[#allocation11 + $0x10] sm:$0xff]
    %v272 = vld [vmem:[#allocation11 + $0x18] sm:$0xff]
    %v273 = vld [vmem:[#allocation11 + $0x20] sm:$0xff]
    %v274 = vld [vmem:[#allocation11 + $0x28] sm:$0xff]
    %v275 = vld [vmem:[#allocation11 + $0x30] sm:$0xff]
    %v276 = vld [vmem:[#allocation11 + $0x38] sm:$0xff]
    %v277 = vld [vmem:[#allocation11 + $0x40] sm:$0xff]
    %v278 = vld [vmem:[#allocation11 + $0x48] sm:$0xff]
    %v279 = vld [vmem:[#allocation11 + $0x50] sm:$0xff]
    %v280 = vld [vmem:[#allocation11 + $0x58] sm:$0xff]
    %v281 = vld [vmem:[#allocation11 + $0x60] sm:$0xff]
    %v282 = vld [vmem:[#allocation11 + $0x68] sm:$0xff]
    %v283 = vld [vmem:[#allocation11 + $0x70] sm:$0xff]
    %v284 = vld [vmem:[#allocation11 + $0x78] sm:$0xff]
    %285 = vmatprep.subr.mxu0 0.0
    %286 = vmatpush1.msra.mxu0 %v284
    %287 = vmatprep.subr.mxu0 0.0
    %288 = vmatpush1.msra.mxu0 %v283
    %289 = vmatprep.subr.mxu0 0.0
    %290 = vmatpush1.msra.mxu0 %v282
    %291 = vmatprep.subr.mxu0 0.0
    %292 = vmatpush1.msra.mxu0 %v281
    %293 = vmatprep.subr.mxu0 0.0
    %294 = vmatpush1.msra.mxu0 %v280
    %295 = vmatprep.subr.mxu0 0.0
    %296 = vmatpush1.msra.mxu0 %v279
    %297 = vmatprep.subr.mxu0 0.0
    %298 = vmatpush1.msra.mxu0 %v278
    %299 = vmatprep.subr.mxu0 0.0
    %300 = vmatpush1.msra.mxu0 %v277
    %301 = vmatprep.subr.mxu0 0.0
    %302 = vmatpush1.msra.mxu0 %v276
    %303 = vmatprep.subr.mxu0 0.0
    %304 = vmatpush1.msra.mxu0 %v275
    %305 = vmatprep.subr.mxu0 0.0
    %306 = vmatpush1.msra.mxu0 %v274
    %307 = vmatprep.subr.mxu0 0.0
    %308 = vmatpush1.msra.mxu0 %v273
    %309 = vmatprep.subr.mxu0 0.0
    %310 = vmatpush1.msra.mxu0 %v272
    %311 = vmatprep.subr.mxu0 0.0
    %312 = vmatpush1.msra.mxu0 %v271
    %313 = vmatprep.subr.mxu0 0.0
    %314 = vmatpush1.msra.mxu0 %v270
    %315 = vmatprep.subr.mxu0 0.0
    %316 = vmatpush1.msra.mxu0 %v269
    %317 = vmatprep.subr.mxu0 0.0
    %318 = vmatpush2.msra.mxu0 0.0
    %319 = vmatprep.subr.mxu0 0.0
    %320 = vmatpush2.msra.mxu0 0.0
    %321 = vmatprep.subr.mxu0 0.0
    %322 = vmatpush2.msra.mxu0 0.0
    %323 = vmatprep.subr.mxu0 0.0
    %324 = vmatpush2.msra.mxu0 0.0
    %325 = vmatprep.subr.mxu0 0.0
    %326 = vmatpush2.msra.mxu0 0.0
    %327 = vmatprep.subr.mxu0 0.0
    %328 = vmatpush2.msra.mxu0 0.0
    %329 = vmatprep.subr.mxu0 0.0
    %330 = vmatpush2.msra.mxu0 0.0
    %331 = vmatprep.subr.mxu0 0.0
    %332 = vmatpush2.msra.mxu0 0.0
    %333 = vmatprep.subr.mxu0 0.0
    %334 = vmatpush2.msra.mxu0 0.0
    %335 = vmatprep.subr.mxu0 0.0
    %336 = vmatpush2.msra.mxu0 0.0
    %337 = vmatprep.subr.mxu0 0.0
    %338 = vmatpush2.msra.mxu0 0.0
    %339 = vmatprep.subr.mxu0 0.0
    %340 = vmatpush2.msra.mxu0 0.0
    %341 = vmatprep.subr.mxu0 0.0
    %342 = vmatpush2.msra.mxu0 0.0
    %343 = vmatprep.subr.mxu0 0.0
    %344 = vmatpush2.msra.mxu0 0.0
    %345 = vmatprep.subr.mxu0 0.0
    %346 = vmatpush2.msra.mxu0 0.0
    %347 = vmatprep.subr.mxu0 0.0
    %348 = vmatpush2.msra.mxu0 0.0
    %349 = vmatprep.mubr.f32.mxu0 0.0
    %350 = vmatmul.mubr.f32.gmra.mxu0 %v268
    %v351 = vpop.f32.mrf.mxu0
    %v352 = vadd.f32 0.0, %v351
    %v353 = vpop.f32.mrf.mxu0
    %354 = vdwg.mxu0
    %v355 = vadd.f32 %v267, %v352
    %v356 = vtanh.pop %v355
    %357 = vst [vmem:[#allocation2] sm:$0xff] %v356
    %358 = vst [vmem:[#allocation4] sm:$0xff] %v356
    %v359 = vld [vmem:[#allocation3 + $0x8] sm:$0xff]
    %v360 = vld [vmem:[#allocation2] sm:$0xff]
    %v361 = vld [vmem:[#allocation11] sm:$0xff]
    %v362 = vld [vmem:[#allocation11 + $0x8] sm:$0xff]
    %v363 = vld [vmem:[#allocation11 + $0x10] sm:$0xff]
    %v364 = vld [vmem:[#allocation11 + $0x18] sm:$0xff]
    %v365 = vld [vmem:[#allocation11 + $0x20] sm:$0xff]
    %v366 = vld [vmem:[#allocation11 + $0x28] sm:$0xff]
    %v367 = vld [vmem:[#allocation11 + $0x30] sm:$0xff]
    %v368 = vld [vmem:[#allocation11 + $0x38] sm:$0xff]
    %v369 = vld [vmem:[#allocation11 + $0x40] sm:$0xff]
    %v370 = vld [vmem:[#allocation11 + $0x48] sm:$0xff]
    %v371 = vld [vmem:[#allocation11 + $0x50] sm:$0xff]
    %v372 = vld [vmem:[#allocation11 + $0x58] sm:$0xff]
    %v373 = vld [vmem:[#allocation11 + $0x60] sm:$0xff]
    %v374 = vld [vmem:[#allocation11 + $0x68] sm:$0xff]
    %v375 = vld [vmem:[#allocation11 + $0x70] sm:$0xff]
    %v376 = vld [vmem:[#allocation11 + $0x78] sm:$0xff]
    %377 = vmatprep.subr.mxu0 0.0
    %378 = vmatpush1.msra.mxu0 %v376
    %379 = vmatprep.subr.mxu0 0.0
    %380 = vmatpush1.msra.mxu0 %v375
    %381 = vmatprep.subr.mxu0 0.0
    %382 = vmatpush1.msra.mxu0 %v374
    %383 = vmatprep.subr.mxu0 0.0
    %384 = vmatpush1.msra.mxu0 %v373
    %385 = vmatprep.subr.mxu0 0.0
    %386 = vmatpush1.msra.mxu0 %v372
    %387 = vmatprep.subr.mxu0 0.0
    %388 = vmatpush1.msra.mxu0 %v371
    %389 = vmatprep.subr.mxu0 0.0
    %390 = vmatpush1.msra.mxu0 %v370
    %391 = vmatprep.subr.mxu0 0.0
    %392 = vmatpush1.msra.mxu0 %v369
    %393 = vmatprep.subr.mxu0 0.0
    %394 = vmatpush1.msra.mxu0 %v368
    %395 = vmatprep.subr.mxu0 0.0
    %396 = vmatpush1.msra.mxu0 %v367
    %397 = vmatprep.subr.mxu0 0.0
    %398 = vmatpush1.msra.mxu0 %v366
    %399 = vmatprep.subr.mxu0 0.0
    %400 = vmatpush1.msra.mxu0 %v365
    %401 = vmatprep.subr.mxu0 0.0
    %402 = vmatpush1.msra.mxu0 %v364
    %403 = vmatprep.subr.mxu0 0.0
    %404 = vmatpush1.msra.mxu0 %v363
    %405 = vmatprep.subr.mxu0 0.0
    %406 = vmatpush1.msra.mxu0 %v362
    %407 = vmatprep.subr.mxu0 0.0
    %408 = vmatpush1.msra.mxu0 %v361
    %409 = vmatprep.subr.mxu0 0.0
    %410 = vmatpush2.msra.mxu0 0.0
    %411 = vmatprep.subr.mxu0 0.0
    %412 = vmatpush2.msra.mxu0 0.0
    %413 = vmatprep.subr.mxu0 0.0
    %414 = vmatpush2.msra.mxu0 0.0
    %415 = vmatprep.subr.mxu0 0.0
    %416 = vmatpush2.msra.mxu0 0.0
    %417 = vmatprep.subr.mxu0 0.0
    %418 = vmatpush2.msra.mxu0 0.0
    %419 = vmatprep.subr.mxu0 0.0
    %420 = vmatpush2.msra.mxu0 0.0
    %421 = vmatprep.subr.mxu0 0.0
    %422 = vmatpush2.msra.mxu0 0.0
    %423 = vmatprep.subr.mxu0 0.0
    %424 = vmatpush2.msra.mxu0 0.0
    %425 = vmatprep.subr.mxu0 0.0
    %426 = vmatpush2.msra.mxu0 0.0
    %427 = vmatprep.subr.mxu0 0.0
    %428 = vmatpush2.msra.mxu0 0.0
    %429 = vmatprep.subr.mxu0 0.0
    %430 = vmatpush2.msra.mxu0 0.0
    %431 = vmatprep.subr.mxu0 0.0
    %432 = vmatpush2.msra.mxu0 0.0
    %433 = vmatprep.subr.mxu0 0.0
    %434 = vmatpush2.msra.mxu0 0.0
    %435 = vmatprep.subr.mxu0 0.0
    %436 = vmatpush2.msra.mxu0 0.0
    %437 = vmatprep.subr.mxu0 0.0
    %438 = vmatpush2.msra.mxu0 0.0
    %439 = vmatprep.subr.mxu0 0.0
    %440 = vmatpush2.msra.mxu0 0.0
    %441 = vmatprep.mubr.f32.mxu0 0.0
    %442 = vmatmul.mubr.f32.gmra.mxu0 %v360
    %v443 = vpop.f32.mrf.mxu0
    %v444 = vadd.f32 0.0, %v443
    %v445 = vpop.f32.mrf.mxu0
    %446 = vdwg.mxu0
    %v447 = vadd.f32 %v359, %v444
    %v448 = vtanh.pop %v447
    %449 = vst [vmem:[#allocation2] sm:$0xff] %v448
    %450 = vst [vmem:[#allocation4 + $0x8] sm:$0xff] %v448
    %v451 = vld [vmem:[#allocation3 + $0x10] sm:$0xff]
    %v452 = vld [vmem:[#allocation2] sm:$0xff]
    %v453 = vld [vmem:[#allocation11] sm:$0xff]
    %v454 = vld [vmem:[#allocation11 + $0x8] sm:$0xff]
    %v455 = vld [vmem:[#allocation11 + $0x10] sm:$0xff]
    %v456 = vld [vmem:[#allocation11 + $0x18] sm:$0xff]
    %v457 = vld [vmem:[#allocation11 + $0x20] sm:$0xff]
    %v458 = vld [vmem:[#allocation11 + $0x28] sm:$0xff]
    %v459 = vld [vmem:[#allocation11 + $0x30] sm:$0xff]
    %v460 = vld [vmem:[#allocation11 + $0x38] sm:$0xff]
    %v461 = vld [vmem:[#allocation11 + $0x40] sm:$0xff]
    %v462 = vld [vmem:[#allocation11 + $0x48] sm:$0xff]
    %v463 = vld [vmem:[#allocation11 + $0x50] sm:$0xff]
    %v464 = vld [vmem:[#allocation11 + $0x58] sm:$0xff]
    %v465 = vld [vmem:[#allocation11 + $0x60] sm:$0xff]
    %v466 = vld [vmem:[#allocation11 + $0x68] sm:$0xff]
    %v467 = vld [vmem:[#allocation11 + $0x70] sm:$0xff]
    %v468 = vld [vmem:[#allocation11 + $0x78] sm:$0xff]
    %469 = vmatprep.subr.mxu0 0.0
    %470 = vmatpush1.msra.mxu0 %v468
    %471 = vmatprep.subr.mxu0 0.0
    %472 = vmatpush1.msra.mxu0 %v467
    %473 = vmatprep.subr.mxu0 0.0
    %474 = vmatpush1.msra.mxu0 %v466
    %475 = vmatprep.subr.mxu0 0.0
    %476 = vmatpush1.msra.mxu0 %v465
    %477 = vmatprep.subr.mxu0 0.0
    %478 = vmatpush1.msra.mxu0 %v464
    %479 = vmatprep.subr.mxu0 0.0
    %480 = vmatpush1.msra.mxu0 %v463
    %481 = vmatprep.subr.mxu0 0.0
    %482 = vmatpush1.msra.mxu0 %v462
    %483 = vmatprep.subr.mxu0 0.0
    %484 = vmatpush1.msra.mxu0 %v461
    %485 = vmatprep.subr.mxu0 0.0
    %486 = vmatpush1.msra.mxu0 %v460
    %487 = vmatprep.subr.mxu0 0.0
    %488 = vmatpush1.msra.mxu0 %v459
    %489 = vmatprep.subr.mxu0 0.0
    %490 = vmatpush1.msra.mxu0 %v458
    %491 = vmatprep.subr.mxu0 0.0
    %492 = vmatpush1.msra.mxu0 %v457
    %493 = vmatprep.subr.mxu0 0.0
    %494 = vmatpush1.msra.mxu0 %v456
    %495 = vmatprep.subr.mxu0 0.0
    %496 = vmatpush1.msra.mxu0 %v455
    %497 = vmatprep.subr.mxu0 0.0
    %498 = vmatpush1.msra.mxu0 %v454
    %499 = vmatprep.subr.mxu0 0.0
    %500 = vmatpush1.msra.mxu0 %v453
    %501 = vmatprep.subr.mxu0 0.0
    %502 = vmatpush2.msra.mxu0 0.0
    %503 = vmatprep.subr.mxu0 0.0
    %504 = vmatpush2.msra.mxu0 0.0
    %505 = vmatprep.subr.mxu0 0.0
    %506 = vmatpush2.msra.mxu0 0.0
    %507 = vmatprep.subr.mxu0 0.0
    %508 = vmatpush2.msra.mxu0 0.0
    %509 = vmatprep.subr.mxu0 0.0
    %510 = vmatpush2.msra.mxu0 0.0
    %511 = vmatprep.subr.mxu0 0.0
    %512 = vmatpush2.msra.mxu0 0.0
    %513 = vmatprep.subr.mxu0 0.0
    %514 = vmatpush2.msra.mxu0 0.0
    %515 = vmatprep.subr.mxu0 0.0
    %516 = vmatpush2.msra.mxu0 0.0
    %517 = vmatprep.subr.mxu0 0.0
    %518 = vmatpush2.msra.mxu0 0.0
    %519 = vmatprep.subr.mxu0 0.0
    %520 = vmatpush2.msra.mxu0 0.0
    %521 = vmatprep.subr.mxu0 0.0
    %522 = vmatpush2.msra.mxu0 0.0
    %523 = vmatprep.subr.mxu0 0.0
    %524 = vmatpush2.msra.mxu0 0.0
    %525 = vmatprep.subr.mxu0 0.0
    %526 = vmatpush2.msra.mxu0 0.0
    %527 = vmatprep.subr.mxu0 0.0
    %528 = vmatpush2.msra.mxu0 0.0
    %529 = vmatprep.subr.mxu0 0.0
    %530 = vmatpush2.msra.mxu0 0.0
    %531 = vmatprep.subr.mxu0 0.0
    %532 = vmatpush2.msra.mxu0 0.0
    %533 = vmatprep.mubr.f32.mxu0 0.0
    %534 = vmatmul.mubr.f32.gmra.mxu0 %v452
    %v535 = vpop.f32.mrf.mxu0
    %v536 = vadd.f32 0.0, %v535
    %v537 = vpop.f32.mrf.mxu0
    %538 = vdwg.mxu0
    %v539 = vadd.f32 %v451, %v536
    %v540 = vtanh.pop %v539
    %541 = vst [vmem:[#allocation2] sm:$0xff] %v540
    %542 = vst [vmem:[#allocation4 + $0x10] sm:$0xff] %v540
    %v543 = vld [vmem:[#allocation3 + $0x18] sm:$0xff]
    %v544 = vld [vmem:[#allocation2] sm:$0xff]
    %v545 = vld [vmem:[#allocation11] sm:$0xff]
    %v546 = vld [vmem:[#allocation11 + $0x8] sm:$0xff]
    %v547 = vld [vmem:[#allocation11 + $0x10] sm:$0xff]
    %v548 = vld [vmem:[#allocation11 + $0x18] sm:$0xff]
    %v549 = vld [vmem:[#allocation11 + $0x20] sm:$0xff]
    %v550 = vld [vmem:[#allocation11 + $0x28] sm:$0xff]
    %v551 = vld [vmem:[#allocation11 + $0x30] sm:$0xff]
    %v552 = vld [vmem:[#allocation11 + $0x38] sm:$0xff]
    %v553 = vld [vmem:[#allocation11 + $0x40] sm:$0xff]
    %v554 = vld [vmem:[#allocation11 + $0x48] sm:$0xff]
    %v555 = vld [vmem:[#allocation11 + $0x50] sm:$0xff]
    %v556 = vld [vmem:[#allocation11 + $0x58] sm:$0xff]
    %v557 = vld [vmem:[#allocation11 + $0x60] sm:$0xff]
    %v558 = vld [vmem:[#allocation11 + $0x68] sm:$0xff]
    %v559 = vld [vmem:[#allocation11 + $0x70] sm:$0xff]
    %v560 = vld [vmem:[#allocation11 + $0x78] sm:$0xff]
    %561 = vmatprep.subr.mxu0 0.0
    %562 = vmatpush1.msra.mxu0 %v560
    %563 = vmatprep.subr.mxu0 0.0
    %564 = vmatpush1.msra.mxu0 %v559
    %565 = vmatprep.subr.mxu0 0.0
    %566 = vmatpush1.msra.mxu0 %v558
    %567 = vmatprep.subr.mxu0 0.0
    %568 = vmatpush1.msra.mxu0 %v557
    %569 = vmatprep.subr.mxu0 0.0
    %570 = vmatpush1.msra.mxu0 %v556
    %571 = vmatprep.subr.mxu0 0.0
    %572 = vmatpush1.msra.mxu0 %v555
    %573 = vmatprep.subr.mxu0 0.0
    %574 = vmatpush1.msra.mxu0 %v554
    %575 = vmatprep.subr.mxu0 0.0
    %576 = vmatpush1.msra.mxu0 %v553
    %577 = vmatprep.subr.mxu0 0.0
    %578 = vmatpush1.msra.mxu0 %v552
    %579 = vmatprep.subr.mxu0 0.0
    %580 = vmatpush1.msra.mxu0 %v551
    %581 = vmatprep.subr.mxu0 0.0
    %582 = vmatpush1.msra.mxu0 %v550
    %583 = vmatprep.subr.mxu0 0.0
    %584 = vmatpush1.msra.mxu0 %v549
    %585 = vmatprep.subr.mxu0 0.0
    %586 = vmatpush1.msra.mxu0 %v548
    %587 = vmatprep.subr.mxu0 0.0
    %588 = vmatpush1.msra.mxu0 %v547
    %589 = vmatprep.subr.mxu0 0.0
    %590 = vmatpush1.msra.mxu0 %v546
    %591 = vmatprep.subr.mxu0 0.0
    %592 = vmatpush1.msra.mxu0 %v545
    %593 = vmatprep.subr.mxu0 0.0
    %594 = vmatpush2.msra.mxu0 0.0
    %595 = vmatprep.subr.mxu0 0.0
    %596 = vmatpush2.msra.mxu0 0.0
    %597 = vmatprep.subr.mxu0 0.0
    %598 = vmatpush2.msra.mxu0 0.0
    %599 = vmatprep.subr.mxu0 0.0
    %600 = vmatpush2.msra.mxu0 0.0
    %601 = vmatprep.subr.mxu0 0.0
    %602 = vmatpush2.msra.mxu0 0.0
    %603 = vmatprep.subr.mxu0 0.0
    %604 = vmatpush2.msra.mxu0 0.0
    %605 = vmatprep.subr.mxu0 0.0
    %606 = vmatpush2.msra.mxu0 0.0
    %607 = vmatprep.subr.mxu0 0.0
    %608 = vmatpush2.msra.mxu0 0.0
    %609 = vmatprep.subr.mxu0 0.0
    %610 = vmatpush2.msra.mxu0 0.0
    %611 = vmatprep.subr.mxu0 0.0
    %612 = vmatpush2.msra.mxu0 0.0
    %613 = vmatprep.subr.mxu0 0.0
    %614 = vmatpush2.msra.mxu0 0.0
    %615 = vmatprep.subr.mxu0 0.0
    %616 = vmatpush2.msra.mxu0 0.0
    %617 = vmatprep.subr.mxu0 0.0
    %618 = vmatpush2.msra.mxu0 0.0
    %619 = vmatprep.subr.mxu0 0.0
    %620 = vmatpush2.msra.mxu0 0.0
    %621 = vmatprep.subr.mxu0 0.0
    %622 = vmatpush2.msra.mxu0 0.0
    %623 = vmatprep.subr.mxu0 0.0
    %624 = vmatpush2.msra.mxu0 0.0
    %625 = vmatprep.mubr.f32.mxu0 0.0
    %626 = vmatmul.mubr.f32.gmra.mxu0 %v544
    %v627 = vpop.f32.mrf.mxu0
    %v628 = vadd.f32 0.0, %v627
    %v629 = vpop.f32.mrf.mxu0
    %630 = vdwg.mxu0
    %v631 = vadd.f32 %v543, %v628
    %v632 = vtanh.pop %v631
    %633 = vst [vmem:[#allocation2] sm:$0xff] %v632
    %634 = vst [vmem:[#allocation4 + $0x18] sm:$0xff] %v632
    %v635 = vld [vmem:[#allocation3 + $0x20] sm:$0xff]
    %v636 = vld [vmem:[#allocation2] sm:$0xff]
    %v637 = vld [vmem:[#allocation11] sm:$0xff]
    %v638 = vld [vmem:[#allocation11 + $0x8] sm:$0xff]
    %v639 = vld [vmem:[#allocation11 + $0x10] sm:$0xff]
    %v640 = vld [vmem:[#allocation11 + $0x18] sm:$0xff]
    %v641 = vld [vmem:[#allocation11 + $0x20] sm:$0xff]
    %v642 = vld [vmem:[#allocation11 + $0x28] sm:$0xff]
    %v643 = vld [vmem:[#allocation11 + $0x30] sm:$0xff]
    %v644 = vld [vmem:[#allocation11 + $0x38] sm:$0xff]
    %v645 = vld [vmem:[#allocation11 + $0x40] sm:$0xff]
    %v646 = vld [vmem:[#allocation11 + $0x48] sm:$0xff]
    %v647 = vld [vmem:[#allocation11 + $0x50] sm:$0xff]
    %v648 = vld [vmem:[#allocation11 + $0x58] sm:$0xff]
    %v649 = vld [vmem:[#allocation11 + $0x60] sm:$0xff]
    %v650 = vld [vmem:[#allocation11 + $0x68] sm:$0xff]
    %v651 = vld [vmem:[#allocation11 + $0x70] sm:$0xff]
    %v652 = vld [vmem:[#allocation11 + $0x78] sm:$0xff]
    %653 = vmatprep.subr.mxu0 0.0
    %654 = vmatpush1.msra.mxu0 %v652
    %655 = vmatprep.subr.mxu0 0.0
    %656 = vmatpush1.msra.mxu0 %v651
    %657 = vmatprep.subr.mxu0 0.0
    %658 = vmatpush1.msra.mxu0 %v650
    %659 = vmatprep.subr.mxu0 0.0
    %660 = vmatpush1.msra.mxu0 %v649
    %661 = vmatprep.subr.mxu0 0.0
    %662 = vmatpush1.msra.mxu0 %v648
    %663 = vmatprep.subr.mxu0 0.0
    %664 = vmatpush1.msra.mxu0 %v647
    %665 = vmatprep.subr.mxu0 0.0
    %666 = vmatpush1.msra.mxu0 %v646
    %667 = vmatprep.subr.mxu0 0.0
    %668 = vmatpush1.msra.mxu0 %v645
    %669 = vmatprep.subr.mxu0 0.0
    %670 = vmatpush1.msra.mxu0 %v644
    %671 = vmatprep.subr.mxu0 0.0
    %672 = vmatpush1.msra.mxu0 %v643
    %673 = vmatprep.subr.mxu0 0.0
    %674 = vmatpush1.msra.mxu0 %v642
    %675 = vmatprep.subr.mxu0 0.0
    %676 = vmatpush1.msra.mxu0 %v641
    %677 = vmatprep.subr.mxu0 0.0
    %678 = vmatpush1.msra.mxu0 %v640
    %679 = vmatprep.subr.mxu0 0.0
    %680 = vmatpush1.msra.mxu0 %v639
    %681 = vmatprep.subr.mxu0 0.0
    %682 = vmatpush1.msra.mxu0 %v638
    %683 = vmatprep.subr.mxu0 0.0
    %684 = vmatpush1.msra.mxu0 %v637
    %685 = vmatprep.subr.mxu0 0.0
    %686 = vmatpush2.msra.mxu0 0.0
    %687 = vmatprep.subr.mxu0 0.0
    %688 = vmatpush2.msra.mxu0 0.0
    %689 = vmatprep.subr.mxu0 0.0
    %690 = vmatpush2.msra.mxu0 0.0
    %691 = vmatprep.subr.mxu0 0.0
    %692 = vmatpush2.msra.mxu0 0.0
    %693 = vmatprep.subr.mxu0 0.0
    %694 = vmatpush2.msra.mxu0 0.0
    %695 = vmatprep.subr.mxu0 0.0
    %696 = vmatpush2.msra.mxu0 0.0
    %697 = vmatprep.subr.mxu0 0.0
    %698 = vmatpush2.msra.mxu0 0.0
    %699 = vmatprep.subr.mxu0 0.0
    %700 = vmatpush2.msra.mxu0 0.0
    %701 = vmatprep.subr.mxu0 0.0
    %702 = vmatpush2.msra.mxu0 0.0
    %703 = vmatprep.subr.mxu0 0.0
    %704 = vmatpush2.msra.mxu0 0.0
    %705 = vmatprep.subr.mxu0 0.0
    %706 = vmatpush2.msra.mxu0 0.0
    %707 = vmatprep.subr.mxu0 0.0
    %708 = vmatpush2.msra.mxu0 0.0
    %709 = vmatprep.subr.mxu0 0.0
    %710 = vmatpush2.msra.mxu0 0.0
    %711 = vmatprep.subr.mxu0 0.0
    %712 = vmatpush2.msra.mxu0 0.0
    %713 = vmatprep.subr.mxu0 0.0
    %714 = vmatpush2.msra.mxu0 0.0
    %715 = vmatprep.subr.mxu0 0.0
    %716 = vmatpush2.msra.mxu0 0.0
    %717 = vmatprep.mubr.f32.mxu0 0.0
    %718 = vmatmul.mubr.f32.gmra.mxu0 %v636
    %v719 = vpop.f32.mrf.mxu0
    %v720 = vadd.f32 0.0, %v719
    %v721 = vpop.f32.mrf.mxu0
    %722 = vdwg.mxu0
    %v723 = vadd.f32 %v635, %v720
    %v724 = vtanh.pop %v723
    %725 = vst [vmem:[#allocation2] sm:$0xff] %v724
    %726 = vst [vmem:[#allocation4 + $0x20] sm:$0xff] %v724
    %v727 = vld [vmem:[#allocation3 + $0x28] sm:$0xff]
    %v728 = vld [vmem:[#allocation2] sm:$0xff]
    %v729 = vld [vmem:[#allocation11] sm:$0xff]
    %v730 = vld [vmem:[#allocation11 + $0x8] sm:$0xff]
    %v731 = vld [vmem:[#allocation11 + $0x10] sm:$0xff]
    %v732 = vld [vmem:[#allocation11 + $0x18] sm:$0xff]
    %v733 = vld [vmem:[#allocation11 + $0x20] sm:$0xff]
    %v734 = vld [vmem:[#allocation11 + $0x28] sm:$0xff]
    %v735 = vld [vmem:[#allocation11 + $0x30] sm:$0xff]
    %v736 = vld [vmem:[#allocation11 + $0x38] sm:$0xff]
    %v737 = vld [vmem:[#allocation11 + $0x40] sm:$0xff]
    %v738 = vld [vmem:[#allocation11 + $0x48] sm:$0xff]
    %v739 = vld [vmem:[#allocation11 + $0x50] sm:$0xff]
    %v740 = vld [vmem:[#allocation11 + $0x58] sm:$0xff]
    %v741 = vld [vmem:[#allocation11 + $0x60] sm:$0xff]
    %v742 = vld [vmem:[#allocation11 + $0x68] sm:$0xff]
    %v743 = vld [vmem:[#allocation11 + $0x70] sm:$0xff]
    %v744 = vld [vmem:[#allocation11 + $0x78] sm:$0xff]
    %745 = vmatprep.subr.mxu0 0.0
    %746 = vmatpush1.msra.mxu0 %v744
    %747 = vmatprep.subr.mxu0 0.0
    %748 = vmatpush1.msra.mxu0 %v743
    %749 = vmatprep.subr.mxu0 0.0
    %750 = vmatpush1.msra.mxu0 %v742
    %751 = vmatprep.subr.mxu0 0.0
    %752 = vmatpush1.msra.mxu0 %v741
    %753 = vmatprep.subr.mxu0 0.0
    %754 = vmatpush1.msra.mxu0 %v740
    %755 = vmatprep.subr.mxu0 0.0
    %756 = vmatpush1.msra.mxu0 %v739
    %757 = vmatprep.subr.mxu0 0.0
    %758 = vmatpush1.msra.mxu0 %v738
    %759 = vmatprep.subr.mxu0 0.0
    %760 = vmatpush1.msra.mxu0 %v737
    %761 = vmatprep.subr.mxu0 0.0
    %762 = vmatpush1.msra.mxu0 %v736
    %763 = vmatprep.subr.mxu0 0.0
    %764 = vmatpush1.msra.mxu0 %v735
    %765 = vmatprep.subr.mxu0 0.0
    %766 = vmatpush1.msra.mxu0 %v734
    %767 = vmatprep.subr.mxu0 0.0
    %768 = vmatpush1.msra.mxu0 %v733
    %769 = vmatprep.subr.mxu0 0.0
    %770 = vmatpush1.msra.mxu0 %v732
    %771 = vmatprep.subr.mxu0 0.0
    %772 = vmatpush1.msra.mxu0 %v731
    %773 = vmatprep.subr.mxu0 0.0
    %774 = vmatpush1.msra.mxu0 %v730
    %775 = vmatprep.subr.mxu0 0.0
    %776 = vmatpush1.msra.mxu0 %v729
    %777 = vmatprep.subr.mxu0 0.0
    %778 = vmatpush2.msra.mxu0 0.0
    %779 = vmatprep.subr.mxu0 0.0
    %780 = vmatpush2.msra.mxu0 0.0
    %781 = vmatprep.subr.mxu0 0.0
    %782 = vmatpush2.msra.mxu0 0.0
    %783 = vmatprep.subr.mxu0 0.0
    %784 = vmatpush2.msra.mxu0 0.0
    %785 = vmatprep.subr.mxu0 0.0
    %786 = vmatpush2.msra.mxu0 0.0
    %787 = vmatprep.subr.mxu0 0.0
    %788 = vmatpush2.msra.mxu0 0.0
    %789 = vmatprep.subr.mxu0 0.0
    %790 = vmatpush2.msra.mxu0 0.0
    %791 = vmatprep.subr.mxu0 0.0
    %792 = vmatpush2.msra.mxu0 0.0
    %793 = vmatprep.subr.mxu0 0.0
    %794 = vmatpush2.msra.mxu0 0.0
    %795 = vmatprep.subr.mxu0 0.0
    %796 = vmatpush2.msra.mxu0 0.0
    %797 = vmatprep.subr.mxu0 0.0
    %798 = vmatpush2.msra.mxu0 0.0
    %799 = vmatprep.subr.mxu0 0.0
    %800 = vmatpush2.msra.mxu0 0.0
    %801 = vmatprep.subr.mxu0 0.0
    %802 = vmatpush2.msra.mxu0 0.0
    %803 = vmatprep.subr.mxu0 0.0
    %804 = vmatpush2.msra.mxu0 0.0
    %805 = vmatprep.subr.mxu0 0.0
    %806 = vmatpush2.msra.mxu0 0.0
    %807 = vmatprep.subr.mxu0 0.0
    %808 = vmatpush2.msra.mxu0 0.0
    %809 = vmatprep.mubr.f32.mxu0 0.0
    %810 = vmatmul.mubr.f32.gmra.mxu0 %v728
    %v811 = vpop.f32.mrf.mxu0
    %v812 = vadd.f32 0.0, %v811
    %v813 = vpop.f32.mrf.mxu0
    %814 = vdwg.mxu0
    %v815 = vadd.f32 %v727, %v812
    %v816 = vtanh.pop %v815
    %817 = vst [vmem:[#allocation2] sm:$0xff] %v816
    %818 = vst [vmem:[#allocation4 + $0x28] sm:$0xff] %v816
    %v819 = vld [vmem:[#allocation3 + $0x30] sm:$0xff]
    %v820 = vld [vmem:[#allocation2] sm:$0xff]
    %v821 = vld [vmem:[#allocation11] sm:$0xff]
    %v822 = vld [vmem:[#allocation11 + $0x8] sm:$0xff]
    %v823 = vld [vmem:[#allocation11 + $0x10] sm:$0xff]
    %v824 = vld [vmem:[#allocation11 + $0x18] sm:$0xff]
    %v825 = vld [vmem:[#allocation11 + $0x20] sm:$0xff]
    %v826 = vld [vmem:[#allocation11 + $0x28] sm:$0xff]
    %v827 = vld [vmem:[#allocation11 + $0x30] sm:$0xff]
    %v828 = vld [vmem:[#allocation11 + $0x38] sm:$0xff]
    %v829 = vld [vmem:[#allocation11 + $0x40] sm:$0xff]
    %v830 = vld [vmem:[#allocation11 + $0x48] sm:$0xff]
    %v831 = vld [vmem:[#allocation11 + $0x50] sm:$0xff]
    %v832 = vld [vmem:[#allocation11 + $0x58] sm:$0xff]
    %v833 = vld [vmem:[#allocation11 + $0x60] sm:$0xff]
    %v834 = vld [vmem:[#allocation11 + $0x68] sm:$0xff]
    %v835 = vld [vmem:[#allocation11 + $0x70] sm:$0xff]
    %v836 = vld [vmem:[#allocation11 + $0x78] sm:$0xff]
    %837 = vmatprep.subr.mxu0 0.0
    %838 = vmatpush1.msra.mxu0 %v836
    %839 = vmatprep.subr.mxu0 0.0
    %840 = vmatpush1.msra.mxu0 %v835
    %841 = vmatprep.subr.mxu0 0.0
    %842 = vmatpush1.msra.mxu0 %v834
    %843 = vmatprep.subr.mxu0 0.0
    %844 = vmatpush1.msra.mxu0 %v833
    %845 = vmatprep.subr.mxu0 0.0
    %846 = vmatpush1.msra.mxu0 %v832
    %847 = vmatprep.subr.mxu0 0.0
    %848 = vmatpush1.msra.mxu0 %v831
    %849 = vmatprep.subr.mxu0 0.0
    %850 = vmatpush1.msra.mxu0 %v830
    %851 = vmatprep.subr.mxu0 0.0
    %852 = vmatpush1.msra.mxu0 %v829
    %853 = vmatprep.subr.mxu0 0.0
    %854 = vmatpush1.msra.mxu0 %v828
    %855 = vmatprep.subr.mxu0 0.0
    %856 = vmatpush1.msra.mxu0 %v827
    %857 = vmatprep.subr.mxu0 0.0
    %858 = vmatpush1.msra.mxu0 %v826
    %859 = vmatprep.subr.mxu0 0.0
    %860 = vmatpush1.msra.mxu0 %v825
    %861 = vmatprep.subr.mxu0 0.0
    %862 = vmatpush1.msra.mxu0 %v824
    %863 = vmatprep.subr.mxu0 0.0
    %864 = vmatpush1.msra.mxu0 %v823
    %865 = vmatprep.subr.mxu0 0.0
    %866 = vmatpush1.msra.mxu0 %v822
    %867 = vmatprep.subr.mxu0 0.0
    %868 = vmatpush1.msra.mxu0 %v821
    %869 = vmatprep.subr.mxu0 0.0
    %870 = vmatpush2.msra.mxu0 0.0
    %871 = vmatprep.subr.mxu0 0.0
    %872 = vmatpush2.msra.mxu0 0.0
    %873 = vmatprep.subr.mxu0 0.0
    %874 = vmatpush2.msra.mxu0 0.0
    %875 = vmatprep.subr.mxu0 0.0
    %876 = vmatpush2.msra.mxu0 0.0
    %877 = vmatprep.subr.mxu0 0.0
    %878 = vmatpush2.msra.mxu0 0.0
    %879 = vmatprep.subr.mxu0 0.0
    %880 = vmatpush2.msra.mxu0 0.0
    %881 = vmatprep.subr.mxu0 0.0
    %882 = vmatpush2.msra.mxu0 0.0
    %883 = vmatprep.subr.mxu0 0.0
    %884 = vmatpush2.msra.mxu0 0.0
    %885 = vmatprep.subr.mxu0 0.0
    %886 = vmatpush2.msra.mxu0 0.0
    %887 = vmatprep.subr.mxu0 0.0
    %888 = vmatpush2.msra.mxu0 0.0
    %889 = vmatprep.subr.mxu0 0.0
    %890 = vmatpush2.msra.mxu0 0.0
    %891 = vmatprep.subr.mxu0 0.0
    %892 = vmatpush2.msra.mxu0 0.0
    %893 = vmatprep.subr.mxu0 0.0
    %894 = vmatpush2.msra.mxu0 0.0
    %895 = vmatprep.subr.mxu0 0.0
    %896 = vmatpush2.msra.mxu0 0.0
    %897 = vmatprep.subr.mxu0 0.0
    %898 = vmatpush2.msra.mxu0 0.0
    %899 = vmatprep.subr.mxu0 0.0
    %900 = vmatpush2.msra.mxu0 0.0
    %901 = vmatprep.mubr.f32.mxu0 0.0
    %902 = vmatmul.mubr.f32.gmra.mxu0 %v820
    %v903 = vpop.f32.mrf.mxu0
    %v904 = vadd.f32 0.0, %v903
    %v905 = vpop.f32.mrf.mxu0
    %906 = vdwg.mxu0
    %v907 = vadd.f32 %v819, %v904
    %v908 = vtanh.pop %v907
    %909 = vst [vmem:[#allocation2] sm:$0xff] %v908
    %910 = vst [vmem:[#allocation4 + $0x30] sm:$0xff] %v908
    %v911 = vld [vmem:[#allocation3 + $0x38] sm:$0xff]
    %v912 = vld [vmem:[#allocation2] sm:$0xff]
    %v913 = vld [vmem:[#allocation11] sm:$0xff]
    %v914 = vld [vmem:[#allocation11 + $0x8] sm:$0xff]
    %v915 = vld [vmem:[#allocation11 + $0x10] sm:$0xff]
    %v916 = vld [vmem:[#allocation11 + $0x18] sm:$0xff]
    %v917 = vld [vmem:[#allocation11 + $0x20] sm:$0xff]
    %v918 = vld [vmem:[#allocation11 + $0x28] sm:$0xff]
    %v919 = vld [vmem:[#allocation11 + $0x30] sm:$0xff]
    %v920 = vld [vmem:[#allocation11 + $0x38] sm:$0xff]
    %v921 = vld [vmem:[#allocation11 + $0x40] sm:$0xff]
    %v922 = vld [vmem:[#allocation11 + $0x48] sm:$0xff]
    %v923 = vld [vmem:[#allocation11 + $0x50] sm:$0xff]
    %v924 = vld [vmem:[#allocation11 + $0x58] sm:$0xff]
    %v925 = vld [vmem:[#allocation11 + $0x60] sm:$0xff]
    %v926 = vld [vmem:[#allocation11 + $0x68] sm:$0xff]
    %v927 = vld [vmem:[#allocation11 + $0x70] sm:$0xff]
    %v928 = vld [vmem:[#allocation11 + $0x78] sm:$0xff]
    %929 = vmatprep.subr.mxu0 0.0
    %930 = vmatpush1.msra.mxu0 %v928
    %931 = vmatprep.subr.mxu0 0.0
    %932 = vmatpush1.msra.mxu0 %v927
    %933 = vmatprep.subr.mxu0 0.0
    %934 = vmatpush1.msra.mxu0 %v926
    %935 = vmatprep.subr.mxu0 0.0
    %936 = vmatpush1.msra.mxu0 %v925
    %937 = vmatprep.subr.mxu0 0.0
    %938 = vmatpush1.msra.mxu0 %v924
    %939 = vmatprep.subr.mxu0 0.0
    %940 = vmatpush1.msra.mxu0 %v923
    %941 = vmatprep.subr.mxu0 0.0
    %942 = vmatpush1.msra.mxu0 %v922
    %943 = vmatprep.subr.mxu0 0.0
    %944 = vmatpush1.msra.mxu0 %v921
    %945 = vmatprep.subr.mxu0 0.0
    %946 = vmatpush1.msra.mxu0 %v920
    %947 = vmatprep.subr.mxu0 0.0
    %948 = vmatpush1.msra.mxu0 %v919
    %949 = vmatprep.subr.mxu0 0.0
    %950 = vmatpush1.msra.mxu0 %v918
    %951 = vmatprep.subr.mxu0 0.0
    %952 = vmatpush1.msra.mxu0 %v917
    %953 = vmatprep.subr.mxu0 0.0
    %954 = vmatpush1.msra.mxu0 %v916
    %955 = vmatprep.subr.mxu0 0.0
    %956 = vmatpush1.msra.mxu0 %v915
    %957 = vmatprep.subr.mxu0 0.0
    %958 = vmatpush1.msra.mxu0 %v914
    %959 = vmatprep.subr.mxu0 0.0
    %960 = vmatpush1.msra.mxu0 %v913
    %961 = vmatprep.subr.mxu0 0.0
    %962 = vmatpush2.msra.mxu0 0.0
    %963 = vmatprep.subr.mxu0 0.0
    %964 = vmatpush2.msra.mxu0 0.0
    %965 = vmatprep.subr.mxu0 0.0
    %966 = vmatpush2.msra.mxu0 0.0
    %967 = vmatprep.subr.mxu0 0.0
    %968 = vmatpush2.msra.mxu0 0.0
    %969 = vmatprep.subr.mxu0 0.0
    %970 = vmatpush2.msra.mxu0 0.0
    %971 = vmatprep.subr.mxu0 0.0
    %972 = vmatpush2.msra.mxu0 0.0
    %973 = vmatprep.subr.mxu0 0.0
    %974 = vmatpush2.msra.mxu0 0.0
    %975 = vmatprep.subr.mxu0 0.0
    %976 = vmatpush2.msra.mxu0 0.0
    %977 = vmatprep.subr.mxu0 0.0
    %978 = vmatpush2.msra.mxu0 0.0
    %979 = vmatprep.subr.mxu0 0.0
    %980 = vmatpush2.msra.mxu0 0.0
    %981 = vmatprep.subr.mxu0 0.0
    %982 = vmatpush2.msra.mxu0 0.0
    %983 = vmatprep.subr.mxu0 0.0
    %984 = vmatpush2.msra.mxu0 0.0
    %985 = vmatprep.subr.mxu0 0.0
    %986 = vmatpush2.msra.mxu0 0.0
    %987 = vmatprep.subr.mxu0 0.0
    %988 = vmatpush2.msra.mxu0 0.0
    %989 = vmatprep.subr.mxu0 0.0
    %990 = vmatpush2.msra.mxu0 0.0
    %991 = vmatprep.subr.mxu0 0.0
    %992 = vmatpush2.msra.mxu0 0.0
    %993 = vmatprep.mubr.f32.mxu0 0.0
    %994 = vmatmul.mubr.f32.gmra.mxu0 %v912
    %v995 = vpop.f32.mrf.mxu0
    %v996 = vadd.f32 0.0, %v995
    %v997 = vpop.f32.mrf.mxu0
    %998 = vdwg.mxu0
    %v999 = vadd.f32 %v911, %v996
    %v1000 = vtanh.pop %v999
    %1001 = vst [vmem:[#allocation2] sm:$0xff] %v1000
    %1002 = vst [vmem:[#allocation4 + $0x38] sm:$0xff] %v1000
    %v1003 = vld [vmem:[#allocation4] sm:$0xff]
    %v1004 = vld [vmem:[#allocation4 + $0x8] sm:$0xff]
    %v1005 = vld [vmem:[#allocation4 + $0x10] sm:$0xff]
    %v1006 = vld [vmem:[#allocation4 + $0x18] sm:$0xff]
    %v1007 = vld [vmem:[#allocation4 + $0x20] sm:$0xff]
    %v1008 = vld [vmem:[#allocation4 + $0x28] sm:$0xff]
    %v1009 = vld [vmem:[#allocation4 + $0x30] sm:$0xff]
    %v1010 = vld [vmem:[#allocation4 + $0x38] sm:$0xff]
    %v1011 = vld [vmem:[#allocation13] sm:$0xff]
    %v1012 = vld [vmem:[#allocation13 + $0x8] sm:$0xff]
    %v1013 = vld [vmem:[#allocation13 + $0x10] sm:$0xff]
    %v1014 = vld [vmem:[#allocation13 + $0x18] sm:$0xff]
    %v1015 = vld [vmem:[#allocation13 + $0x20] sm:$0xff]
    %v1016 = vld [vmem:[#allocation13 + $0x28] sm:$0xff]
    %v1017 = vld [vmem:[#allocation13 + $0x30] sm:$0xff]
    %v1018 = vld [vmem:[#allocation13 + $0x38] sm:$0xff]
    %v1019 = vld [vmem:[#allocation13 + $0x40] sm:$0xff]
    %v1020 = vld [vmem:[#allocation13 + $0x48] sm:$0xff]
    %v1021 = vld [vmem:[#allocation13 + $0x50] sm:$0xff]
    %v1022 = vld [vmem:[#allocation13 + $0x58] sm:$0xff]
    %v1023 = vld [vmem:[#allocation13 + $0x60] sm:$0xff]
    %v1024 = vld [vmem:[#allocation13 + $0x68] sm:$0xff]
    %v1025 = vld [vmem:[#allocation13 + $0x70] sm:$0xff]
    %v1026 = vld [vmem:[#allocation13 + $0x78] sm:$0xff]
    %v1027 = vld [vmem:[%s7] sm:$0x1]
    %v1029 = vlaneseq
    %v1030 = vshrl.u32 %v1029, 7
    %v1031 = vsub.s32 0, %v1030
    %v1032 = vrot.slane %v1027, %v1031
    %1034 = vmatprep.subr.mxu0 0.0
    %1035 = vmatpush1.msra.mxu0 %v1026
    %1036 = vmatprep.subr.mxu0 0.0
    %1037 = vmatpush1.msra.mxu0 %v1025
    %1038 = vmatprep.subr.mxu0 0.0
    %1039 = vmatpush1.msra.mxu0 %v1024
    %1040 = vmatprep.subr.mxu0 0.0
    %1041 = vmatpush1.msra.mxu0 %v1023
    %1042 = vmatprep.subr.mxu0 0.0
    %1043 = vmatpush1.msra.mxu0 %v1022
    %1044 = vmatprep.subr.mxu0 0.0
    %1045 = vmatpush1.msra.mxu0 %v1021
    %1046 = vmatprep.subr.mxu0 0.0
    %1047 = vmatpush1.msra.mxu0 %v1020
    %1048 = vmatprep.subr.mxu0 0.0
    %1049 = vmatpush1.msra.mxu0 %v1019
    %1050 = vmatprep.subr.mxu0 0.0
    %1051 = vmatpush1.msra.mxu0 %v1018
    %1052 = vmatprep.subr.mxu0 0.0
    %1053 = vmatpush1.msra.mxu0 %v1017
    %1054 = vmatprep.subr.mxu0 0.0
    %1055 = vmatpush1.msra.mxu0 %v1016
    %1056 = vmatprep.subr.mxu0 0.0
    %1057 = vmatpush1.msra.mxu0 %v1015
    %1058 = vmatprep.subr.mxu0 0.0
    %1059 = vmatpush1.msra.mxu0 %v1014
    %1060 = vmatprep.subr.mxu0 0.0
    %1061 = vmatpush1.msra.mxu0 %v1013
    %1062 = vmatprep.subr.mxu0 0.0
    %1063 = vmatpush1.msra.mxu0 %v1012
    %1064 = vmatprep.subr.mxu0 0.0
    %1065 = vmatpush1.msra.mxu0 %v1011
    %1066 = vmatprep.subr.mxu0 0.0
    %1067 = vmatpush2.msra.mxu0 0.0
    %1068 = vmatprep.subr.mxu0 0.0
    %1069 = vmatpush2.msra.mxu0 0.0
    %1070 = vmatprep.subr.mxu0 0.0
    %1071 = vmatpush2.msra.mxu0 0.0
    %1072 = vmatprep.subr.mxu0 0.0
    %1073 = vmatpush2.msra.mxu0 0.0
    %1074 = vmatprep.subr.mxu0 0.0
    %1075 = vmatpush2.msra.mxu0 0.0
    %1076 = vmatprep.subr.mxu0 0.0
    %1077 = vmatpush2.msra.mxu0 0.0
    %1078 = vmatprep.subr.mxu0 0.0
    %1079 = vmatpush2.msra.mxu0 0.0
    %1080 = vmatprep.subr.mxu0 0.0
    %1081 = vmatpush2.msra.mxu0 0.0
    %1082 = vmatprep.subr.mxu0 0.0
    %1083 = vmatpush2.msra.mxu0 0.0
    %1084 = vmatprep.subr.mxu0 0.0
    %1085 = vmatpush2.msra.mxu0 0.0
    %1086 = vmatprep.subr.mxu0 0.0
    %1087 = vmatpush2.msra.mxu0 0.0
    %1088 = vmatprep.subr.mxu0 0.0
    %1089 = vmatpush2.msra.mxu0 0.0
    %1090 = vmatprep.subr.mxu0 0.0
    %1091 = vmatpush2.msra.mxu0 0.0
    %1092 = vmatprep.subr.mxu0 0.0
    %1093 = vmatpush2.msra.mxu0 0.0
    %1094 = vmatprep.subr.mxu0 0.0
    %1095 = vmatpush2.msra.mxu0 0.0
    %1096 = vmatprep.subr.mxu0 0.0
    %1097 = vmatpush2.msra.mxu0 0.0
    %1098 = vmatprep.mubr.f32.mxu0 0.0
    %1099 = vmatmul.mubr.f32.gmra.mxu0 %v1003
    %v1100 = vpop.f32.mrf.mxu0
    %v1101 = vadd.f32 %v1032, %v1100
    %v1102 = vpop.f32.mrf.mxu0
    %1103 = vmatprep.mubr.f32.mxu0 0.0
    %1104 = vmatmul.mubr.f32.gmra.mxu0 %v1004
    %v1105 = vpop.f32.mrf.mxu0
    %v1106 = vadd.f32 %v1032, %v1105
    %v1107 = vpop.f32.mrf.mxu0
    %1108 = vmatprep.mubr.f32.mxu0 0.0
    %1109 = vmatmul.mubr.f32.gmra.mxu0 %v1005
    %v1110 = vpop.f32.mrf.mxu0
    %v1111 = vadd.f32 %v1032, %v1110
    %v1112 = vpop.f32.mrf.mxu0
    %1113 = vmatprep.mubr.f32.mxu0 0.0
    %1114 = vmatmul.mubr.f32.gmra.mxu0 %v1006
    %v1115 = vpop.f32.mrf.mxu0
    %v1116 = vadd.f32 %v1032, %v1115
    %v1117 = vpop.f32.mrf.mxu0
    %1118 = vmatprep.mubr.f32.mxu0 0.0
    %1119 = vmatmul.mubr.f32.gmra.mxu0 %v1007
    %v1120 = vpop.f32.mrf.mxu0
    %v1121 = vadd.f32 %v1032, %v1120
    %v1122 = vpop.f32.mrf.mxu0
    %1123 = vmatprep.mubr.f32.mxu0 0.0
    %1124 = vmatmul.mubr.f32.gmra.mxu0 %v1008
    %v1125 = vpop.f32.mrf.mxu0
    %v1126 = vadd.f32 %v1032, %v1125
    %v1127 = vpop.f32.mrf.mxu0
    %1128 = vmatprep.mubr.f32.mxu0 0.0
    %1129 = vmatmul.mubr.f32.gmra.mxu0 %v1009
    %v1130 = vpop.f32.mrf.mxu0
    %v1131 = vadd.f32 %v1032, %v1130
    %v1132 = vpop.f32.mrf.mxu0
    %1133 = vmatprep.mubr.f32.mxu0 0.0
    %1134 = vmatmul.mubr.f32.gmra.mxu0 %v1010
    %v1135 = vpop.f32.mrf.mxu0
    %v1136 = vadd.f32 %v1032, %v1135
    %v1137 = vpop.f32.mrf.mxu0
    %1138 = vdwg.mxu0
    %1139 = vst [vmem:[#allocation3] sm:$0xff] %v1101
    %1140 = vst [vmem:[#allocation3 + $0x8] sm:$0xff] %v1106
    %1141 = vst [vmem:[#allocation3 + $0x10] sm:$0xff] %v1111
    %1142 = vst [vmem:[#allocation3 + $0x18] sm:$0xff] %v1116
    %1143 = vst [vmem:[#allocation3 + $0x20] sm:$0xff] %v1121
    %1144 = vst [vmem:[#allocation3 + $0x28] sm:$0xff] %v1126
    %1145 = vst [vmem:[#allocation3 + $0x30] sm:$0xff] %v1131
    %1146 = vst [vmem:[#allocation3 + $0x38] sm:$0xff] %v1136
    %v1147 = vld [vmem:[#allocation3] sm:$0xff]
    %s1148 = scalar_lea.vmem [#allocation2], 8
    %v1149 = vld [vmem:[%s1148] sm:$0xff]
    %v1150 = vld [vmem:[#allocation14] sm:$0xff]
    %v1151 = vld [vmem:[#allocation14 + $0x8] sm:$0xff]
    %v1152 = vld [vmem:[#allocation14 + $0x10] sm:$0xff]
    %v1153 = vld [vmem:[#allocation14 + $0x18] sm:$0xff]
    %v1154 = vld [vmem:[#allocation14 + $0x20] sm:$0xff]
    %v1155 = vld [vmem:[#allocation14 + $0x28] sm:$0xff]
    %v1156 = vld [vmem:[#allocation14 + $0x30] sm:$0xff]
    %v1157 = vld [vmem:[#allocation14 + $0x38] sm:$0xff]
    %v1158 = vld [vmem:[#allocation14 + $0x40] sm:$0xff]
    %v1159 = vld [vmem:[#allocation14 + $0x48] sm:$0xff]
    %v1160 = vld [vmem:[#allocation14 + $0x50] sm:$0xff]
    %v1161 = vld [vmem:[#allocation14 + $0x58] sm:$0xff]
    %v1162 = vld [vmem:[#allocation14 + $0x60] sm:$0xff]
    %v1163 = vld [vmem:[#allocation14 + $0x68] sm:$0xff]
    %v1164 = vld [vmem:[#allocation14 + $0x70] sm:$0xff]
    %v1165 = vld [vmem:[#allocation14 + $0x78] sm:$0xff]
    %1166 = vmatprep.subr.mxu0 0.0
    %1167 = vmatpush1.msra.mxu0 %v1165
    %1168 = vmatprep.subr.mxu0 0.0
    %1169 = vmatpush1.msra.mxu0 %v1164
    %1170 = vmatprep.subr.mxu0 0.0
    %1171 = vmatpush1.msra.mxu0 %v1163
    %1172 = vmatprep.subr.mxu0 0.0
    %1173 = vmatpush1.msra.mxu0 %v1162
    %1174 = vmatprep.subr.mxu0 0.0
    %1175 = vmatpush1.msra.mxu0 %v1161
    %1176 = vmatprep.subr.mxu0 0.0
    %1177 = vmatpush1.msra.mxu0 %v1160
    %1178 = vmatprep.subr.mxu0 0.0
    %1179 = vmatpush1.msra.mxu0 %v1159
    %1180 = vmatprep.subr.mxu0 0.0
    %1181 = vmatpush1.msra.mxu0 %v1158
    %1182 = vmatprep.subr.mxu0 0.0
    %1183 = vmatpush1.msra.mxu0 %v1157
    %1184 = vmatprep.subr.mxu0 0.0
    %1185 = vmatpush1.msra.mxu0 %v1156
    %1186 = vmatprep.subr.mxu0 0.0
    %1187 = vmatpush1.msra.mxu0 %v1155
    %1188 = vmatprep.subr.mxu0 0.0
    %1189 = vmatpush1.msra.mxu0 %v1154
    %1190 = vmatprep.subr.mxu0 0.0
    %1191 = vmatpush1.msra.mxu0 %v1153
    %1192 = vmatprep.subr.mxu0 0.0
    %1193 = vmatpush1.msra.mxu0 %v1152
    %1194 = vmatprep.subr.mxu0 0.0
    %1195 = vmatpush1.msra.mxu0 %v1151
    %1196 = vmatprep.subr.mxu0 0.0
    %1197 = vmatpush1.msra.mxu0 %v1150
    %1198 = vmatprep.subr.mxu0 0.0
    %1199 = vmatpush2.msra.mxu0 0.0
    %1200 = vmatprep.subr.mxu0 0.0
    %1201 = vmatpush2.msra.mxu0 0.0
    %1202 = vmatprep.subr.mxu0 0.0
    %1203 = vmatpush2.msra.mxu0 0.0
    %1204 = vmatprep.subr.mxu0 0.0
    %1205 = vmatpush2.msra.mxu0 0.0
    %1206 = vmatprep.subr.mxu0 0.0
    %1207 = vmatpush2.msra.mxu0 0.0
    %1208 = vmatprep.subr.mxu0 0.0
    %1209 = vmatpush2.msra.mxu0 0.0
    %1210 = vmatprep.subr.mxu0 0.0
    %1211 = vmatpush2.msra.mxu0 0.0
    %1212 = vmatprep.subr.mxu0 0.0
    %1213 = vmatpush2.msra.mxu0 0.0
    %1214 = vmatprep.subr.mxu0 0.0
    %1215 = vmatpush2.msra.mxu0 0.0
    %1216 = vmatprep.subr.mxu0 0.0
    %1217 = vmatpush2.msra.mxu0 0.0
    %1218 = vmatprep.subr.mxu0 0.0
    %1219 = vmatpush2.msra.mxu0 0.0
    %1220 = vmatprep.subr.mxu0 0.0
    %1221 = vmatpush2.msra.mxu0 0.0
    %1222 = vmatprep.subr.mxu0 0.0
    %1223 = vmatpush2.msra.mxu0 0.0
    %1224 = vmatprep.subr.mxu0 0.0
    %1225 = vmatpush2.msra.mxu0 0.0
    %1226 = vmatprep.subr.mxu0 0.0
    %1227 = vmatpush2.msra.mxu0 0.0
    %1228 = vmatprep.subr.mxu0 0.0
    %1229 = vmatpush2.msra.mxu0 0.0
    %1230 = vmatprep.mubr.f32.mxu0 0.0
    %1231 = vmatmul.mubr.f32.gmra.mxu0 %v1149
    %v1232 = vpop.f32.mrf.mxu0
    %v1233 = vadd.f32 0.0, %v1232
    %v1234 = vpop.f32.mrf.mxu0
    %1235 = vdwg.mxu0
    %v1236 = vadd.f32 %v1147, %v1233
    %v1237 = vtanh.pop %v1236
    %1238 = vst [vmem:[%s1148] sm:$0xff] %v1237
    %1239 = vst [vmem:[#allocation16] sm:$0xff] %v1237
    %v1240 = vld [vmem:[#allocation3 + $0x8] sm:$0xff]
    %v1241 = vld [vmem:[%s1148] sm:$0xff]
    %v1242 = vld [vmem:[#allocation14] sm:$0xff]
    %v1243 = vld [vmem:[#allocation14 + $0x8] sm:$0xff]
    %v1244 = vld [vmem:[#allocation14 + $0x10] sm:$0xff]
    %v1245 = vld [vmem:[#allocation14 + $0x18] sm:$0xff]
    %v1246 = vld [vmem:[#allocation14 + $0x20] sm:$0xff]
    %v1247 = vld [vmem:[#allocation14 + $0x28] sm:$0xff]
    %v1248 = vld [vmem:[#allocation14 + $0x30] sm:$0xff]
    %v1249 = vld [vmem:[#allocation14 + $0x38] sm:$0xff]
    %v1250 = vld [vmem:[#allocation14 + $0x40] sm:$0xff]
    %v1251 = vld [vmem:[#allocation14 + $0x48] sm:$0xff]
    %v1252 = vld [vmem:[#allocation14 + $0x50] sm:$0xff]
    %v1253 = vld [vmem:[#allocation14 + $0x58] sm:$0xff]
    %v1254 = vld [vmem:[#allocation14 + $0x60] sm:$0xff]
    %v1255 = vld [vmem:[#allocation14 + $0x68] sm:$0xff]
    %v1256 = vld [vmem:[#allocation14 + $0x70] sm:$0xff]
    %v1257 = vld [vmem:[#allocation14 + $0x78] sm:$0xff]
    %1258 = vmatprep.subr.mxu0 0.0
    %1259 = vmatpush1.msra.mxu0 %v1257
    %1260 = vmatprep.subr.mxu0 0.0
    %1261 = vmatpush1.msra.mxu0 %v1256
    %1262 = vmatprep.subr.mxu0 0.0
    %1263 = vmatpush1.msra.mxu0 %v1255
    %1264 = vmatprep.subr.mxu0 0.0
    %1265 = vmatpush1.msra.mxu0 %v1254
    %1266 = vmatprep.subr.mxu0 0.0
    %1267 = vmatpush1.msra.mxu0 %v1253
    %1268 = vmatprep.subr.mxu0 0.0
    %1269 = vmatpush1.msra.mxu0 %v1252
    %1270 = vmatprep.subr.mxu0 0.0
    %1271 = vmatpush1.msra.mxu0 %v1251
    %1272 = vmatprep.subr.mxu0 0.0
    %1273 = vmatpush1.msra.mxu0 %v1250
    %1274 = vmatprep.subr.mxu0 0.0
    %1275 = vmatpush1.msra.mxu0 %v1249
    %1276 = vmatprep.subr.mxu0 0.0
    %1277 = vmatpush1.msra.mxu0 %v1248
    %1278 = vmatprep.subr.mxu0 0.0
    %1279 = vmatpush1.msra.mxu0 %v1247
    %1280 = vmatprep.subr.mxu0 0.0
    %1281 = vmatpush1.msra.mxu0 %v1246
    %1282 = vmatprep.subr.mxu0 0.0
    %1283 = vmatpush1.msra.mxu0 %v1245
    %1284 = vmatprep.subr.mxu0 0.0
    %1285 = vmatpush1.msra.mxu0 %v1244
    %1286 = vmatprep.subr.mxu0 0.0
    %1287 = vmatpush1.msra.mxu0 %v1243
    %1288 = vmatprep.subr.mxu0 0.0
    %1289 = vmatpush1.msra.mxu0 %v1242
    %1290 = vmatprep.subr.mxu0 0.0
    %1291 = vmatpush2.msra.mxu0 0.0
    %1292 = vmatprep.subr.mxu0 0.0
    %1293 = vmatpush2.msra.mxu0 0.0
    %1294 = vmatprep.subr.mxu0 0.0
    %1295 = vmatpush2.msra.mxu0 0.0
    %1296 = vmatprep.subr.mxu0 0.0
    %1297 = vmatpush2.msra.mxu0 0.0
    %1298 = vmatprep.subr.mxu0 0.0
    %1299 = vmatpush2.msra.mxu0 0.0
    %1300 = vmatprep.subr.mxu0 0.0
    %1301 = vmatpush2.msra.mxu0 0.0
    %1302 = vmatprep.subr.mxu0 0.0
    %1303 = vmatpush2.msra.mxu0 0.0
    %1304 = vmatprep.subr.mxu0 0.0
    %1305 = vmatpush2.msra.mxu0 0.0
    %1306 = vmatprep.subr.mxu0 0.0
    %1307 = vmatpush2.msra.mxu0 0.0
    %1308 = vmatprep.subr.mxu0 0.0
    %1309 = vmatpush2.msra.mxu0 0.0
    %1310 = vmatprep.subr.mxu0 0.0
    %1311 = vmatpush2.msra.mxu0 0.0
    %1312 = vmatprep.subr.mxu0 0.0
    %1313 = vmatpush2.msra.mxu0 0.0
    %1314 = vmatprep.subr.mxu0 0.0
    %1315 = vmatpush2.msra.mxu0 0.0
    %1316 = vmatprep.subr.mxu0 0.0
    %1317 = vmatpush2.msra.mxu0 0.0
    %1318 = vmatprep.subr.mxu0 0.0
    %1319 = vmatpush2.msra.mxu0 0.0
    %1320 = vmatprep.subr.mxu0 0.0
    %1321 = vmatpush2.msra.mxu0 0.0
    %1322 = vmatprep.mubr.f32.mxu0 0.0
    %1323 = vmatmul.mubr.f32.gmra.mxu0 %v1241
    %v1324 = vpop.f32.mrf.mxu0
    %v1325 = vadd.f32 0.0, %v1324
    %v1326 = vpop.f32.mrf.mxu0
    %1327 = vdwg.mxu0
    %v1328 = vadd.f32 %v1240, %v1325
    %v1329 = vtanh.pop %v1328
    %1330 = vst [vmem:[%s1148] sm:$0xff] %v1329
    %s1331 = scalar_lea.vmem [#allocation16], 8
    %1332 = vst [vmem:[%s1331] sm:$0xff] %v1329
    %v1333 = vld [vmem:[#allocation3 + $0x10] sm:$0xff]
    %v1334 = vld [vmem:[%s1148] sm:$0xff]
    %v1335 = vld [vmem:[#allocation14] sm:$0xff]
    %v1336 = vld [vmem:[#allocation14 + $0x8] sm:$0xff]
    %v1337 = vld [vmem:[#allocation14 + $0x10] sm:$0xff]
    %v1338 = vld [vmem:[#allocation14 + $0x18] sm:$0xff]
    %v1339 = vld [vmem:[#allocation14 + $0x20] sm:$0xff]
    %v1340 = vld [vmem:[#allocation14 + $0x28] sm:$0xff]
    %v1341 = vld [vmem:[#allocation14 + $0x30] sm:$0xff]
    %v1342 = vld [vmem:[#allocation14 + $0x38] sm:$0xff]
    %v1343 = vld [vmem:[#allocation14 + $0x40] sm:$0xff]
    %v1344 = vld [vmem:[#allocation14 + $0x48] sm:$0xff]
    %v1345 = vld [vmem:[#allocation14 + $0x50] sm:$0xff]
    %v1346 = vld [vmem:[#allocation14 + $0x58] sm:$0xff]
    %v1347 = vld [vmem:[#allocation14 + $0x60] sm:$0xff]
    %v1348 = vld [vmem:[#allocation14 + $0x68] sm:$0xff]
    %v1349 = vld [vmem:[#allocation14 + $0x70] sm:$0xff]
    %v1350 = vld [vmem:[#allocation14 + $0x78] sm:$0xff]
    %1351 = vmatprep.subr.mxu0 0.0
    %1352 = vmatpush1.msra.mxu0 %v1350
    %1353 = vmatprep.subr.mxu0 0.0
    %1354 = vmatpush1.msra.mxu0 %v1349
    %1355 = vmatprep.subr.mxu0 0.0
    %1356 = vmatpush1.msra.mxu0 %v1348
    %1357 = vmatprep.subr.mxu0 0.0
    %1358 = vmatpush1.msra.mxu0 %v1347
    %1359 = vmatprep.subr.mxu0 0.0
    %1360 = vmatpush1.msra.mxu0 %v1346
    %1361 = vmatprep.subr.mxu0 0.0
    %1362 = vmatpush1.msra.mxu0 %v1345
    %1363 = vmatprep.subr.mxu0 0.0
    %1364 = vmatpush1.msra.mxu0 %v1344
    %1365 = vmatprep.subr.mxu0 0.0
    %1366 = vmatpush1.msra.mxu0 %v1343
    %1367 = vmatprep.subr.mxu0 0.0
    %1368 = vmatpush1.msra.mxu0 %v1342
    %1369 = vmatprep.subr.mxu0 0.0
    %1370 = vmatpush1.msra.mxu0 %v1341
    %1371 = vmatprep.subr.mxu0 0.0
    %1372 = vmatpush1.msra.mxu0 %v1340
    %1373 = vmatprep.subr.mxu0 0.0
    %1374 = vmatpush1.msra.mxu0 %v1339
    %1375 = vmatprep.subr.mxu0 0.0
    %1376 = vmatpush1.msra.mxu0 %v1338
    %1377 = vmatprep.subr.mxu0 0.0
    %1378 = vmatpush1.msra.mxu0 %v1337
    %1379 = vmatprep.subr.mxu0 0.0
    %1380 = vmatpush1.msra.mxu0 %v1336
    %1381 = vmatprep.subr.mxu0 0.0
    %1382 = vmatpush1.msra.mxu0 %v1335
    %1383 = vmatprep.subr.mxu0 0.0
    %1384 = vmatpush2.msra.mxu0 0.0
    %1385 = vmatprep.subr.mxu0 0.0
    %1386 = vmatpush2.msra.mxu0 0.0
    %1387 = vmatprep.subr.mxu0 0.0
    %1388 = vmatpush2.msra.mxu0 0.0
    %1389 = vmatprep.subr.mxu0 0.0
    %1390 = vmatpush2.msra.mxu0 0.0
    %1391 = vmatprep.subr.mxu0 0.0
    %1392 = vmatpush2.msra.mxu0 0.0
    %1393 = vmatprep.subr.mxu0 0.0
    %1394 = vmatpush2.msra.mxu0 0.0
    %1395 = vmatprep.subr.mxu0 0.0
    %1396 = vmatpush2.msra.mxu0 0.0
    %1397 = vmatprep.subr.mxu0 0.0
    %1398 = vmatpush2.msra.mxu0 0.0
    %1399 = vmatprep.subr.mxu0 0.0
    %1400 = vmatpush2.msra.mxu0 0.0
    %1401 = vmatprep.subr.mxu0 0.0
    %1402 = vmatpush2.msra.mxu0 0.0
    %1403 = vmatprep.subr.mxu0 0.0
    %1404 = vmatpush2.msra.mxu0 0.0
    %1405 = vmatprep.subr.mxu0 0.0
    %1406 = vmatpush2.msra.mxu0 0.0
    %1407 = vmatprep.subr.mxu0 0.0
    %1408 = vmatpush2.msra.mxu0 0.0
    %1409 = vmatprep.subr.mxu0 0.0
    %1410 = vmatpush2.msra.mxu0 0.0
    %1411 = vmatprep.subr.mxu0 0.0
    %1412 = vmatpush2.msra.mxu0 0.0
    %1413 = vmatprep.subr.mxu0 0.0
    %1414 = vmatpush2.msra.mxu0 0.0
    %1415 = vmatprep.mubr.f32.mxu0 0.0
    %1416 = vmatmul.mubr.f32.gmra.mxu0 %v1334
    %v1417 = vpop.f32.mrf.mxu0
    %v1418 = vadd.f32 0.0, %v1417
    %v1419 = vpop.f32.mrf.mxu0
    %1420 = vdwg.mxu0
    %v1421 = vadd.f32 %v1333, %v1418
    %v1422 = vtanh.pop %v1421
    %1423 = vst [vmem:[%s1148] sm:$0xff] %v1422
    %s1424 = scalar_lea.vmem [#allocation16], 16
    %1425 = vst [vmem:[%s1424] sm:$0xff] %v1422
    %v1426 = vld [vmem:[#allocation3 + $0x18] sm:$0xff]
    %v1427 = vld [vmem:[%s1148] sm:$0xff]
    %v1428 = vld [vmem:[#allocation14] sm:$0xff]
    %v1429 = vld [vmem:[#allocation14 + $0x8] sm:$0xff]
    %v1430 = vld [vmem:[#allocation14 + $0x10] sm:$0xff]
    %v1431 = vld [vmem:[#allocation14 + $0x18] sm:$0xff]
    %v1432 = vld [vmem:[#allocation14 + $0x20] sm:$0xff]
    %v1433 = vld [vmem:[#allocation14 + $0x28] sm:$0xff]
    %v1434 = vld [vmem:[#allocation14 + $0x30] sm:$0xff]
    %v1435 = vld [vmem:[#allocation14 + $0x38] sm:$0xff]
    %v1436 = vld [vmem:[#allocation14 + $0x40] sm:$0xff]
    %v1437 = vld [vmem:[#allocation14 + $0x48] sm:$0xff]
    %v1438 = vld [vmem:[#allocation14 + $0x50] sm:$0xff]
    %v1439 = vld [vmem:[#allocation14 + $0x58] sm:$0xff]
    %v1440 = vld [vmem:[#allocation14 + $0x60] sm:$0xff]
    %v1441 = vld [vmem:[#allocation14 + $0x68] sm:$0xff]
    %v1442 = vld [vmem:[#allocation14 + $0x70] sm:$0xff]
    %v1443 = vld [vmem:[#allocation14 + $0x78] sm:$0xff]
    %1444 = vmatprep.subr.mxu0 0.0
    %1445 = vmatpush1.msra.mxu0 %v1443
    %1446 = vmatprep.subr.mxu0 0.0
    %1447 = vmatpush1.msra.mxu0 %v1442
    %1448 = vmatprep.subr.mxu0 0.0
    %1449 = vmatpush1.msra.mxu0 %v1441
    %1450 = vmatprep.subr.mxu0 0.0
    %1451 = vmatpush1.msra.mxu0 %v1440
    %1452 = vmatprep.subr.mxu0 0.0
    %1453 = vmatpush1.msra.mxu0 %v1439
    %1454 = vmatprep.subr.mxu0 0.0
    %1455 = vmatpush1.msra.mxu0 %v1438
    %1456 = vmatprep.subr.mxu0 0.0
    %1457 = vmatpush1.msra.mxu0 %v1437
    %1458 = vmatprep.subr.mxu0 0.0
    %1459 = vmatpush1.msra.mxu0 %v1436
    %1460 = vmatprep.subr.mxu0 0.0
    %1461 = vmatpush1.msra.mxu0 %v1435
    %1462 = vmatprep.subr.mxu0 0.0
    %1463 = vmatpush1.msra.mxu0 %v1434
    %1464 = vmatprep.subr.mxu0 0.0
    %1465 = vmatpush1.msra.mxu0 %v1433
    %1466 = vmatprep.subr.mxu0 0.0
    %1467 = vmatpush1.msra.mxu0 %v1432
    %1468 = vmatprep.subr.mxu0 0.0
    %1469 = vmatpush1.msra.mxu0 %v1431
    %1470 = vmatprep.subr.mxu0 0.0
    %1471 = vmatpush1.msra.mxu0 %v1430
    %1472 = vmatprep.subr.mxu0 0.0
    %1473 = vmatpush1.msra.mxu0 %v1429
    %1474 = vmatprep.subr.mxu0 0.0
    %1475 = vmatpush1.msra.mxu0 %v1428
    %1476 = vmatprep.subr.mxu0 0.0
    %1477 = vmatpush2.msra.mxu0 0.0
    %1478 = vmatprep.subr.mxu0 0.0
    %1479 = vmatpush2.msra.mxu0 0.0
    %1480 = vmatprep.subr.mxu0 0.0
    %1481 = vmatpush2.msra.mxu0 0.0
    %1482 = vmatprep.subr.mxu0 0.0
    %1483 = vmatpush2.msra.mxu0 0.0
    %1484 = vmatprep.subr.mxu0 0.0
    %1485 = vmatpush2.msra.mxu0 0.0
    %1486 = vmatprep.subr.mxu0 0.0
    %1487 = vmatpush2.msra.mxu0 0.0
    %1488 = vmatprep.subr.mxu0 0.0
    %1489 = vmatpush2.msra.mxu0 0.0
    %1490 = vmatprep.subr.mxu0 0.0
    %1491 = vmatpush2.msra.mxu0 0.0
    %1492 = vmatprep.subr.mxu0 0.0
    %1493 = vmatpush2.msra.mxu0 0.0
    %1494 = vmatprep.subr.mxu0 0.0
    %1495 = vmatpush2.msra.mxu0 0.0
    %1496 = vmatprep.subr.mxu0 0.0
    %1497 = vmatpush2.msra.mxu0 0.0
    %1498 = vmatprep.subr.mxu0 0.0
    %1499 = vmatpush2.msra.mxu0 0.0
    %1500 = vmatprep.subr.mxu0 0.0
    %1501 = vmatpush2.msra.mxu0 0.0
    %1502 = vmatprep.subr.mxu0 0.0
    %1503 = vmatpush2.msra.mxu0 0.0
    %1504 = vmatprep.subr.mxu0 0.0
    %1505 = vmatpush2.msra.mxu0 0.0
    %1506 = vmatprep.subr.mxu0 0.0
    %1507 = vmatpush2.msra.mxu0 0.0
    %1508 = vmatprep.mubr.f32.mxu0 0.0
    %1509 = vmatmul.mubr.f32.gmra.mxu0 %v1427
    %v1510 = vpop.f32.mrf.mxu0
    %v1511 = vadd.f32 0.0, %v1510
    %v1512 = vpop.f32.mrf.mxu0
    %1513 = vdwg.mxu0
    %v1514 = vadd.f32 %v1426, %v1511
    %v1515 = vtanh.pop %v1514
    %1516 = vst [vmem:[%s1148] sm:$0xff] %v1515
    %s1517 = scalar_lea.vmem [#allocation16], 24
    %1518 = vst [vmem:[%s1517] sm:$0xff] %v1515
    %v1519 = vld [vmem:[#allocation3 + $0x20] sm:$0xff]
    %v1520 = vld [vmem:[%s1148] sm:$0xff]
    %v1521 = vld [vmem:[#allocation14] sm:$0xff]
    %v1522 = vld [vmem:[#allocation14 + $0x8] sm:$0xff]
    %v1523 = vld [vmem:[#allocation14 + $0x10] sm:$0xff]
    %v1524 = vld [vmem:[#allocation14 + $0x18] sm:$0xff]
    %v1525 = vld [vmem:[#allocation14 + $0x20] sm:$0xff]
    %v1526 = vld [vmem:[#allocation14 + $0x28] sm:$0xff]
    %v1527 = vld [vmem:[#allocation14 + $0x30] sm:$0xff]
    %v1528 = vld [vmem:[#allocation14 + $0x38] sm:$0xff]
    %v1529 = vld [vmem:[#allocation14 + $0x40] sm:$0xff]
    %v1530 = vld [vmem:[#allocation14 + $0x48] sm:$0xff]
    %v1531 = vld [vmem:[#allocation14 + $0x50] sm:$0xff]
    %v1532 = vld [vmem:[#allocation14 + $0x58] sm:$0xff]
    %v1533 = vld [vmem:[#allocation14 + $0x60] sm:$0xff]
    %v1534 = vld [vmem:[#allocation14 + $0x68] sm:$0xff]
    %v1535 = vld [vmem:[#allocation14 + $0x70] sm:$0xff]
    %v1536 = vld [vmem:[#allocation14 + $0x78] sm:$0xff]
    %1537 = vmatprep.subr.mxu0 0.0
    %1538 = vmatpush1.msra.mxu0 %v1536
    %1539 = vmatprep.subr.mxu0 0.0
    %1540 = vmatpush1.msra.mxu0 %v1535
    %1541 = vmatprep.subr.mxu0 0.0
    %1542 = vmatpush1.msra.mxu0 %v1534
    %1543 = vmatprep.subr.mxu0 0.0
    %1544 = vmatpush1.msra.mxu0 %v1533
    %1545 = vmatprep.subr.mxu0 0.0
    %1546 = vmatpush1.msra.mxu0 %v1532
    %1547 = vmatprep.subr.mxu0 0.0
    %1548 = vmatpush1.msra.mxu0 %v1531
    %1549 = vmatprep.subr.mxu0 0.0
    %1550 = vmatpush1.msra.mxu0 %v1530
    %1551 = vmatprep.subr.mxu0 0.0
    %1552 = vmatpush1.msra.mxu0 %v1529
    %1553 = vmatprep.subr.mxu0 0.0
    %1554 = vmatpush1.msra.mxu0 %v1528
    %1555 = vmatprep.subr.mxu0 0.0
    %1556 = vmatpush1.msra.mxu0 %v1527
    %1557 = vmatprep.subr.mxu0 0.0
    %1558 = vmatpush1.msra.mxu0 %v1526
    %1559 = vmatprep.subr.mxu0 0.0
    %1560 = vmatpush1.msra.mxu0 %v1525
    %1561 = vmatprep.subr.mxu0 0.0
    %1562 = vmatpush1.msra.mxu0 %v1524
    %1563 = vmatprep.subr.mxu0 0.0
    %1564 = vmatpush1.msra.mxu0 %v1523
    %1565 = vmatprep.subr.mxu0 0.0
    %1566 = vmatpush1.msra.mxu0 %v1522
    %1567 = vmatprep.subr.mxu0 0.0
    %1568 = vmatpush1.msra.mxu0 %v1521
    %1569 = vmatprep.subr.mxu0 0.0
    %1570 = vmatpush2.msra.mxu0 0.0
    %1571 = vmatprep.subr.mxu0 0.0
    %1572 = vmatpush2.msra.mxu0 0.0
    %1573 = vmatprep.subr.mxu0 0.0
    %1574 = vmatpush2.msra.mxu0 0.0
    %1575 = vmatprep.subr.mxu0 0.0
    %1576 = vmatpush2.msra.mxu0 0.0
    %1577 = vmatprep.subr.mxu0 0.0
    %1578 = vmatpush2.msra.mxu0 0.0
    %1579 = vmatprep.subr.mxu0 0.0
    %1580 = vmatpush2.msra.mxu0 0.0
    %1581 = vmatprep.subr.mxu0 0.0
    %1582 = vmatpush2.msra.mxu0 0.0
    %1583 = vmatprep.subr.mxu0 0.0
    %1584 = vmatpush2.msra.mxu0 0.0
    %1585 = vmatprep.subr.mxu0 0.0
    %1586 = vmatpush2.msra.mxu0 0.0
    %1587 = vmatprep.subr.mxu0 0.0
    %1588 = vmatpush2.msra.mxu0 0.0
    %1589 = vmatprep.subr.mxu0 0.0
    %1590 = vmatpush2.msra.mxu0 0.0
    %1591 = vmatprep.subr.mxu0 0.0
    %1592 = vmatpush2.msra.mxu0 0.0
    %1593 = vmatprep.subr.mxu0 0.0
    %1594 = vmatpush2.msra.mxu0 0.0
    %1595 = vmatprep.subr.mxu0 0.0
    %1596 = vmatpush2.msra.mxu0 0.0
    %1597 = vmatprep.subr.mxu0 0.0
    %1598 = vmatpush2.msra.mxu0 0.0
    %1599 = vmatprep.subr.mxu0 0.0
    %1600 = vmatpush2.msra.mxu0 0.0
    %1601 = vmatprep.mubr.f32.mxu0 0.0
    %1602 = vmatmul.mubr.f32.gmra.mxu0 %v1520
    %v1603 = vpop.f32.mrf.mxu0
    %v1604 = vadd.f32 0.0, %v1603
    %v1605 = vpop.f32.mrf.mxu0
    %1606 = vdwg.mxu0
    %v1607 = vadd.f32 %v1519, %v1604
    %v1608 = vtanh.pop %v1607
    %1609 = vst [vmem:[%s1148] sm:$0xff] %v1608
    %s1610 = scalar_lea.vmem [#allocation16], 32
    %1611 = vst [vmem:[%s1610] sm:$0xff] %v1608
    %v1612 = vld [vmem:[#allocation3 + $0x28] sm:$0xff]
    %v1613 = vld [vmem:[%s1148] sm:$0xff]
    %v1614 = vld [vmem:[#allocation14] sm:$0xff]
    %v1615 = vld [vmem:[#allocation14 + $0x8] sm:$0xff]
    %v1616 = vld [vmem:[#allocation14 + $0x10] sm:$0xff]
    %v1617 = vld [vmem:[#allocation14 + $0x18] sm:$0xff]
    %v1618 = vld [vmem:[#allocation14 + $0x20] sm:$0xff]
    %v1619 = vld [vmem:[#allocation14 + $0x28] sm:$0xff]
    %v1620 = vld [vmem:[#allocation14 + $0x30] sm:$0xff]
    %v1621 = vld [vmem:[#allocation14 + $0x38] sm:$0xff]
    %v1622 = vld [vmem:[#allocation14 + $0x40] sm:$0xff]
    %v1623 = vld [vmem:[#allocation14 + $0x48] sm:$0xff]
    %v1624 = vld [vmem:[#allocation14 + $0x50] sm:$0xff]
    %v1625 = vld [vmem:[#allocation14 + $0x58] sm:$0xff]
    %v1626 = vld [vmem:[#allocation14 + $0x60] sm:$0xff]
    %v1627 = vld [vmem:[#allocation14 + $0x68] sm:$0xff]
    %v1628 = vld [vmem:[#allocation14 + $0x70] sm:$0xff]
    %v1629 = vld [vmem:[#allocation14 + $0x78] sm:$0xff]
    %1630 = vmatprep.subr.mxu0 0.0
    %1631 = vmatpush1.msra.mxu0 %v1629
    %1632 = vmatprep.subr.mxu0 0.0
    %1633 = vmatpush1.msra.mxu0 %v1628
    %1634 = vmatprep.subr.mxu0 0.0
    %1635 = vmatpush1.msra.mxu0 %v1627
    %1636 = vmatprep.subr.mxu0 0.0
    %1637 = vmatpush1.msra.mxu0 %v1626
    %1638 = vmatprep.subr.mxu0 0.0
    %1639 = vmatpush1.msra.mxu0 %v1625
    %1640 = vmatprep.subr.mxu0 0.0
    %1641 = vmatpush1.msra.mxu0 %v1624
    %1642 = vmatprep.subr.mxu0 0.0
    %1643 = vmatpush1.msra.mxu0 %v1623
    %1644 = vmatprep.subr.mxu0 0.0
    %1645 = vmatpush1.msra.mxu0 %v1622
    %1646 = vmatprep.subr.mxu0 0.0
    %1647 = vmatpush1.msra.mxu0 %v1621
    %1648 = vmatprep.subr.mxu0 0.0
    %1649 = vmatpush1.msra.mxu0 %v1620
    %1650 = vmatprep.subr.mxu0 0.0
    %1651 = vmatpush1.msra.mxu0 %v1619
    %1652 = vmatprep.subr.mxu0 0.0
    %1653 = vmatpush1.msra.mxu0 %v1618
    %1654 = vmatprep.subr.mxu0 0.0
    %1655 = vmatpush1.msra.mxu0 %v1617
    %1656 = vmatprep.subr.mxu0 0.0
    %1657 = vmatpush1.msra.mxu0 %v1616
    %1658 = vmatprep.subr.mxu0 0.0
    %1659 = vmatpush1.msra.mxu0 %v1615
    %1660 = vmatprep.subr.mxu0 0.0
    %1661 = vmatpush1.msra.mxu0 %v1614
    %1662 = vmatprep.subr.mxu0 0.0
    %1663 = vmatpush2.msra.mxu0 0.0
    %1664 = vmatprep.subr.mxu0 0.0
    %1665 = vmatpush2.msra.mxu0 0.0
    %1666 = vmatprep.subr.mxu0 0.0
    %1667 = vmatpush2.msra.mxu0 0.0
    %1668 = vmatprep.subr.mxu0 0.0
    %1669 = vmatpush2.msra.mxu0 0.0
    %1670 = vmatprep.subr.mxu0 0.0
    %1671 = vmatpush2.msra.mxu0 0.0
    %1672 = vmatprep.subr.mxu0 0.0
    %1673 = vmatpush2.msra.mxu0 0.0
    %1674 = vmatprep.subr.mxu0 0.0
    %1675 = vmatpush2.msra.mxu0 0.0
    %1676 = vmatprep.subr.mxu0 0.0
    %1677 = vmatpush2.msra.mxu0 0.0
    %1678 = vmatprep.subr.mxu0 0.0
    %1679 = vmatpush2.msra.mxu0 0.0
    %1680 = vmatprep.subr.mxu0 0.0
    %1681 = vmatpush2.msra.mxu0 0.0
    %1682 = vmatprep.subr.mxu0 0.0
    %1683 = vmatpush2.msra.mxu0 0.0
    %1684 = vmatprep.subr.mxu0 0.0
    %1685 = vmatpush2.msra.mxu0 0.0
    %1686 = vmatprep.subr.mxu0 0.0
    %1687 = vmatpush2.msra.mxu0 0.0
    %1688 = vmatprep.subr.mxu0 0.0
    %1689 = vmatpush2.msra.mxu0 0.0
    %1690 = vmatprep.subr.mxu0 0.0
    %1691 = vmatpush2.msra.mxu0 0.0
    %1692 = vmatprep.subr.mxu0 0.0
    %1693 = vmatpush2.msra.mxu0 0.0
    %1694 = vmatprep.mubr.f32.mxu0 0.0
    %1695 = vmatmul.mubr.f32.gmra.mxu0 %v1613
    %v1696 = vpop.f32.mrf.mxu0
    %v1697 = vadd.f32 0.0, %v1696
    %v1698 = vpop.f32.mrf.mxu0
    %1699 = vdwg.mxu0
    %v1700 = vadd.f32 %v1612, %v1697
    %v1701 = vtanh.pop %v1700
    %1702 = vst [vmem:[%s1148] sm:$0xff] %v1701
    %s1703 = scalar_lea.vmem [#allocation16], 40
    %1704 = vst [vmem:[%s1703] sm:$0xff] %v1701
    %v1705 = vld [vmem:[#allocation3 + $0x30] sm:$0xff]
    %v1706 = vld [vmem:[%s1148] sm:$0xff]
    %v1707 = vld [vmem:[#allocation14] sm:$0xff]
    %v1708 = vld [vmem:[#allocation14 + $0x8] sm:$0xff]
    %v1709 = vld [vmem:[#allocation14 + $0x10] sm:$0xff]
    %v1710 = vld [vmem:[#allocation14 + $0x18] sm:$0xff]
    %v1711 = vld [vmem:[#allocation14 + $0x20] sm:$0xff]
    %v1712 = vld [vmem:[#allocation14 + $0x28] sm:$0xff]
    %v1713 = vld [vmem:[#allocation14 + $0x30] sm:$0xff]
    %v1714 = vld [vmem:[#allocation14 + $0x38] sm:$0xff]
    %v1715 = vld [vmem:[#allocation14 + $0x40] sm:$0xff]
    %v1716 = vld [vmem:[#allocation14 + $0x48] sm:$0xff]
    %v1717 = vld [vmem:[#allocation14 + $0x50] sm:$0xff]
    %v1718 = vld [vmem:[#allocation14 + $0x58] sm:$0xff]
    %v1719 = vld [vmem:[#allocation14 + $0x60] sm:$0xff]
    %v1720 = vld [vmem:[#allocation14 + $0x68] sm:$0xff]
    %v1721 = vld [vmem:[#allocation14 + $0x70] sm:$0xff]
    %v1722 = vld [vmem:[#allocation14 + $0x78] sm:$0xff]
    %1723 = vmatprep.subr.mxu0 0.0
    %1724 = vmatpush1.msra.mxu0 %v1722
    %1725 = vmatprep.subr.mxu0 0.0
    %1726 = vmatpush1.msra.mxu0 %v1721
    %1727 = vmatprep.subr.mxu0 0.0
    %1728 = vmatpush1.msra.mxu0 %v1720
    %1729 = vmatprep.subr.mxu0 0.0
    %1730 = vmatpush1.msra.mxu0 %v1719
    %1731 = vmatprep.subr.mxu0 0.0
    %1732 = vmatpush1.msra.mxu0 %v1718
    %1733 = vmatprep.subr.mxu0 0.0
    %1734 = vmatpush1.msra.mxu0 %v1717
    %1735 = vmatprep.subr.mxu0 0.0
    %1736 = vmatpush1.msra.mxu0 %v1716
    %1737 = vmatprep.subr.mxu0 0.0
    %1738 = vmatpush1.msra.mxu0 %v1715
    %1739 = vmatprep.subr.mxu0 0.0
    %1740 = vmatpush1.msra.mxu0 %v1714
    %1741 = vmatprep.subr.mxu0 0.0
    %1742 = vmatpush1.msra.mxu0 %v1713
    %1743 = vmatprep.subr.mxu0 0.0
    %1744 = vmatpush1.msra.mxu0 %v1712
    %1745 = vmatprep.subr.mxu0 0.0
    %1746 = vmatpush1.msra.mxu0 %v1711
    %1747 = vmatprep.subr.mxu0 0.0
    %1748 = vmatpush1.msra.mxu0 %v1710
    %1749 = vmatprep.subr.mxu0 0.0
    %1750 = vmatpush1.msra.mxu0 %v1709
    %1751 = vmatprep.subr.mxu0 0.0
    %1752 = vmatpush1.msra.mxu0 %v1708
    %1753 = vmatprep.subr.mxu0 0.0
    %1754 = vmatpush1.msra.mxu0 %v1707
    %1755 = vmatprep.subr.mxu0 0.0
    %1756 = vmatpush2.msra.mxu0 0.0
    %1757 = vmatprep.subr.mxu0 0.0
    %1758 = vmatpush2.msra.mxu0 0.0
    %1759 = vmatprep.subr.mxu0 0.0
    %1760 = vmatpush2.msra.mxu0 0.0
    %1761 = vmatprep.subr.mxu0 0.0
    %1762 = vmatpush2.msra.mxu0 0.0
    %1763 = vmatprep.subr.mxu0 0.0
    %1764 = vmatpush2.msra.mxu0 0.0
    %1765 = vmatprep.subr.mxu0 0.0
    %1766 = vmatpush2.msra.mxu0 0.0
    %1767 = vmatprep.subr.mxu0 0.0
    %1768 = vmatpush2.msra.mxu0 0.0
    %1769 = vmatprep.subr.mxu0 0.0
    %1770 = vmatpush2.msra.mxu0 0.0
    %1771 = vmatprep.subr.mxu0 0.0
    %1772 = vmatpush2.msra.mxu0 0.0
    %1773 = vmatprep.subr.mxu0 0.0
    %1774 = vmatpush2.msra.mxu0 0.0
    %1775 = vmatprep.subr.mxu0 0.0
    %1776 = vmatpush2.msra.mxu0 0.0
    %1777 = vmatprep.subr.mxu0 0.0
    %1778 = vmatpush2.msra.mxu0 0.0
    %1779 = vmatprep.subr.mxu0 0.0
    %1780 = vmatpush2.msra.mxu0 0.0
    %1781 = vmatprep.subr.mxu0 0.0
    %1782 = vmatpush2.msra.mxu0 0.0
    %1783 = vmatprep.subr.mxu0 0.0
    %1784 = vmatpush2.msra.mxu0 0.0
    %1785 = vmatprep.subr.mxu0 0.0
    %1786 = vmatpush2.msra.mxu0 0.0
    %1787 = vmatprep.mubr.f32.mxu0 0.0
    %1788 = vmatmul.mubr.f32.gmra.mxu0 %v1706
    %v1789 = vpop.f32.mrf.mxu0
    %v1790 = vadd.f32 0.0, %v1789
    %v1791 = vpop.f32.mrf.mxu0
    %1792 = vdwg.mxu0
    %v1793 = vadd.f32 %v1705, %v1790
    %v1794 = vtanh.pop %v1793
    %1795 = vst [vmem:[%s1148] sm:$0xff] %v1794
    %s1796 = scalar_lea.vmem [#allocation16], 48
    %1797 = vst [vmem:[%s1796] sm:$0xff] %v1794
    %v1798 = vld [vmem:[#allocation3 + $0x38] sm:$0xff]
    %v1799 = vld [vmem:[%s1148] sm:$0xff]
    %v1800 = vld [vmem:[#allocation14] sm:$0xff]
    %v1801 = vld [vmem:[#allocation14 + $0x8] sm:$0xff]
    %v1802 = vld [vmem:[#allocation14 + $0x10] sm:$0xff]
    %v1803 = vld [vmem:[#allocation14 + $0x18] sm:$0xff]
    %v1804 = vld [vmem:[#allocation14 + $0x20] sm:$0xff]
    %v1805 = vld [vmem:[#allocation14 + $0x28] sm:$0xff]
    %v1806 = vld [vmem:[#allocation14 + $0x30] sm:$0xff]
    %v1807 = vld [vmem:[#allocation14 + $0x38] sm:$0xff]
    %v1808 = vld [vmem:[#allocation14 + $0x40] sm:$0xff]
    %v1809 = vld [vmem:[#allocation14 + $0x48] sm:$0xff]
    %v1810 = vld [vmem:[#allocation14 + $0x50] sm:$0xff]
    %v1811 = vld [vmem:[#allocation14 + $0x58] sm:$0xff]
    %v1812 = vld [vmem:[#allocation14 + $0x60] sm:$0xff]
    %v1813 = vld [vmem:[#allocation14 + $0x68] sm:$0xff]
    %v1814 = vld [vmem:[#allocation14 + $0x70] sm:$0xff]
    %v1815 = vld [vmem:[#allocation14 + $0x78] sm:$0xff]
    %1816 = vmatprep.subr.mxu0 0.0
    %1817 = vmatpush1.msra.mxu0 %v1815
    %1818 = vmatprep.subr.mxu0 0.0
    %1819 = vmatpush1.msra.mxu0 %v1814
    %1820 = vmatprep.subr.mxu0 0.0
    %1821 = vmatpush1.msra.mxu0 %v1813
    %1822 = vmatprep.subr.mxu0 0.0
    %1823 = vmatpush1.msra.mxu0 %v1812
    %1824 = vmatprep.subr.mxu0 0.0
    %1825 = vmatpush1.msra.mxu0 %v1811
    %1826 = vmatprep.subr.mxu0 0.0
    %1827 = vmatpush1.msra.mxu0 %v1810
    %1828 = vmatprep.subr.mxu0 0.0
    %1829 = vmatpush1.msra.mxu0 %v1809
    %1830 = vmatprep.subr.mxu0 0.0
    %1831 = vmatpush1.msra.mxu0 %v1808
    %1832 = vmatprep.subr.mxu0 0.0
    %1833 = vmatpush1.msra.mxu0 %v1807
    %1834 = vmatprep.subr.mxu0 0.0
    %1835 = vmatpush1.msra.mxu0 %v1806
    %1836 = vmatprep.subr.mxu0 0.0
    %1837 = vmatpush1.msra.mxu0 %v1805
    %1838 = vmatprep.subr.mxu0 0.0
    %1839 = vmatpush1.msra.mxu0 %v1804
    %1840 = vmatprep.subr.mxu0 0.0
    %1841 = vmatpush1.msra.mxu0 %v1803
    %1842 = vmatprep.subr.mxu0 0.0
    %1843 = vmatpush1.msra.mxu0 %v1802
    %1844 = vmatprep.subr.mxu0 0.0
    %1845 = vmatpush1.msra.mxu0 %v1801
    %1846 = vmatprep.subr.mxu0 0.0
    %1847 = vmatpush1.msra.mxu0 %v1800
    %1848 = vmatprep.subr.mxu0 0.0
    %1849 = vmatpush2.msra.mxu0 0.0
    %1850 = vmatprep.subr.mxu0 0.0
    %1851 = vmatpush2.msra.mxu0 0.0
    %1852 = vmatprep.subr.mxu0 0.0
    %1853 = vmatpush2.msra.mxu0 0.0
    %1854 = vmatprep.subr.mxu0 0.0
    %1855 = vmatpush2.msra.mxu0 0.0
    %1856 = vmatprep.subr.mxu0 0.0
    %1857 = vmatpush2.msra.mxu0 0.0
    %1858 = vmatprep.subr.mxu0 0.0
    %1859 = vmatpush2.msra.mxu0 0.0
    %1860 = vmatprep.subr.mxu0 0.0
    %1861 = vmatpush2.msra.mxu0 0.0
    %1862 = vmatprep.subr.mxu0 0.0
    %1863 = vmatpush2.msra.mxu0 0.0
    %1864 = vmatprep.subr.mxu0 0.0
    %1865 = vmatpush2.msra.mxu0 0.0
    %1866 = vmatprep.subr.mxu0 0.0
    %1867 = vmatpush2.msra.mxu0 0.0
    %1868 = vmatprep.subr.mxu0 0.0
    %1869 = vmatpush2.msra.mxu0 0.0
    %1870 = vmatprep.subr.mxu0 0.0
    %1871 = vmatpush2.msra.mxu0 0.0
    %1872 = vmatprep.subr.mxu0 0.0
    %1873 = vmatpush2.msra.mxu0 0.0
    %1874 = vmatprep.subr.mxu0 0.0
    %1875 = vmatpush2.msra.mxu0 0.0
    %1876 = vmatprep.subr.mxu0 0.0
    %1877 = vmatpush2.msra.mxu0 0.0
    %1878 = vmatprep.subr.mxu0 0.0
    %1879 = vmatpush2.msra.mxu0 0.0
    %1880 = vmatprep.mubr.f32.mxu0 0.0
    %1881 = vmatmul.mubr.f32.gmra.mxu0 %v1799
    %v1882 = vpop.f32.mrf.mxu0
    %v1883 = vadd.f32 0.0, %v1882
    %v1884 = vpop.f32.mrf.mxu0
    %1885 = vdwg.mxu0
    %v1886 = vadd.f32 %v1798, %v1883
    %v1887 = vtanh.pop %v1886
    %1888 = vst [vmem:[%s1148] sm:$0xff] %v1887
    %s1889 = scalar_lea.vmem [#allocation16], 56
    %1890 = vst [vmem:[%s1889] sm:$0xff] %v1887
    // Predicated region
    $region62: #{tpu_custom_call.1} parent=1 // pred_check
      %p1891 = pneg %p115
    $region63: #{tpu_custom_call.1} parent=1 // pred_check_branch
      %1893 = sbr.rel (%p1891) target = $region65
    $region64: #{tpu_custom_call.1} parent=1 // pred_region
      %v1894 = vld [vmem:[#allocation2] sm:$0xff]
      %v1895 = vld [vmem:[#allocation2 + $0x8] sm:$0xff]
      %1896 = vst [vmem:[#allocation17] sm:$0xff] %v1894
      %1897 = vst [vmem:[#allocation17 + $0x8] sm:$0xff] %v1895
    $region65: #{tpu_custom_call.1} parent=1 // pred_fallthru
      _
    // Predicated region
    $region66: #{tpu_custom_call.1} parent=1 // pred_check
      _
    $region67: #{tpu_custom_call.1} parent=1 // pred_check_branch
      %1899 = sbr.rel (0) target = $region69
    $region68: #{tpu_custom_call.1} parent=1 // pred_region
      %s1901 = ssub.s32 1024, 1024
      %1902 = vsyncadd [#allocation7], %s1901
      %s1903 = sshll.u32 [#allocation16], 4
      %s1904 = int_to_ptr.vmem [resolvable:$true] %s1903
      %1909 = dma.vmem_to_hbm [thread:$0]  %s1904, 1024, %s8, [#allocation7], 128, 128, 8
    $region69: #{tpu_custom_call.1} parent=1 // pred_fallthru
      _
    // Predicated region
    $region70: #{tpu_custom_call.1} parent=1 // pred_check
      _
    $region71: #{tpu_custom_call.1} parent=1 // pred_check_branch
      %1911 = sbr.rel (0) target = $region73
    $region72: #{tpu_custom_call.1} parent=1 // pred_region
      %s1913 = ssub.s32 256, 256
      %1914 = vsyncadd [#allocation18], %s1913
      %s1915 = sshll.u32 [#allocation17], 4
      %s1916 = int_to_ptr.vmem [resolvable:$true] %s1915
      %1921 = dma.vmem_to_hbm [thread:$0]  %s1916, 256, %s9, [#allocation18], 128, 128, 8
    $region73: #{tpu_custom_call.1} parent=1 // pred_fallthru
      _
    // Predicated region
    $region74: #{tpu_custom_call.1} parent=1 // pred_check
      _
    $region75: #{tpu_custom_call.1} parent=1 // pred_check_branch
      %1923 = sbr.rel (0) target = $region77
    $region76: #{tpu_custom_call.1} parent=1 // pred_region
      %1924 = dma.done [#allocation7], 1024
    $region77: #{tpu_custom_call.1} parent=1 // pred_fallthru
      _
    // Predicated region
    $region78: #{tpu_custom_call.1} parent=1 // pred_check
      _
    $region79: #{tpu_custom_call.1} parent=1 // pred_check_branch
      %1926 = sbr.rel (0) target = $region81
    $region80: #{tpu_custom_call.1} parent=1 // pred_region
      %1927 = dma.done [#allocation18], 256
    $region81: #{tpu_custom_call.1} parent=1 // pred_fallthru
      _
    %1928 = vsyncpa [#allocation6], 1
    %1929 = vsyncpa [#allocation9], 1
    %1930 = vsyncpa [#allocation12], 1
    %1931 = vsyncpa [#allocation15], 1
    %1932 = vsyncpa [#allocation7], 1
    %1933 = vsyncpa [#allocation18], 1

</llo_original>
